<compile_context>
chip_gen: v7x
topology: tpu7x:2x2x1
jax: 0.10.0
libtpu: 0.0.40
codegen_flags: <defaults>
</compile_context>

<pallas_src>
import numpy as np
import jax
import jax.numpy as jnp
from jax.experimental import pallas as pl
from jax.experimental.pallas import tpu as pltpu


_PALLAS_MIN_ELEMS = 2048  # below this, pallas_call fixed overhead > all compute


def _round_up(x, m):
    return ((x + m - 1) // m) * m


def _choose_batch_tile(B, N):
    """Batch tile Bt (multiple of 8) sized against scoped VMEM + megacore.

    VMEM per step ~= 6 keypoint streams * 2 pipeline buffers * Bt*N*4 bytes
    = 48*N*Bt bytes; keep it under ~8 MiB so it fits v5e's 16 MiB scoped
    default (and well under v7x's 64 MiB physical) with headroom.
    """
    cap = (8 * 1024 * 1024) // max(48 * N, 1)
    cap = max(8, (min(256, cap) // 8) * 8)
    b8 = _round_up(B, 8)
    bt = min(b8, cap)
    # Prefer >= 2 grid steps when there is enough batch, so the "parallel"
    # grid axis can be split across v7x's two TensorCores.
    if b8 >= 16 and bt >= b8:
        bt = max(8, _round_up(b8 // 2, 8))
    return bt


def _transformation_loss_kernel(pred_ref, gt_ref,
                                sx_ref, sy_ref, sz_ref,
                                tx_ref, ty_ref, tz_ref,
                                out_ref):
    # pred_ref / gt_ref: (Bt, 16) row-major flattened 4x4 transforms.
    # s*_ref / t*_ref:   (Bt, N) coordinate planes (batch on sublanes, pts on lanes).
    # out_ref:           (Bt, 128) lane-dense slab; lane0=cos(RE), lane1=TE, lane2=RMSE.
    P = pred_ref[...]
    G = gt_ref[...]

    # trace(Rp^T @ Rg) == sum of elementwise products of the 9 rotation entries
    # (row-major flat indices 0,1,2, 4,5,6, 8,9,10).
    PG = P * G
    tr = (PG[:, 0:1] + PG[:, 1:2] + PG[:, 2:3]
          + PG[:, 4:5] + PG[:, 5:6] + PG[:, 6:7]
          + PG[:, 8:9] + PG[:, 9:10] + PG[:, 10:11])          # (Bt, 1)
    cos_v = jnp.clip(0.5 * (tr - 1.0), -1.0, 1.0)             # (Bt, 1)

    # translation error: ||t_pred - t_gt|| * 100   (flat indices 3, 7, 11)
    d0 = P[:, 3:4] - G[:, 3:4]
    d1 = P[:, 7:8] - G[:, 7:8]
    d2 = P[:, 11:12] - G[:, 11:12]
    te_v = jnp.sqrt(d0 * d0 + d1 * d1 + d2 * d2) * 100.0      # (Bt, 1)

    # Rigid transform of the keypoints, vectorized over the whole (Bt, N) tile.
    # Per-batch coefficients are (Bt, 1) lane slices broadcast against (Bt, N):
    # pure VPU broadcast-multiply/add, explicit per-coordinate accumulation
    # (no sublane reduce), sqrt on the EUP, single cross-lane mean on the XLU.
    sx = sx_ref[...]
    sy = sy_ref[...]
    sz = sz_ref[...]
    dx = P[:, 0:1] * sx + P[:, 1:2] * sy + P[:, 2:3] * sz + P[:, 3:4] - tx_ref[...]
    dy = P[:, 4:5] * sx + P[:, 5:6] * sy + P[:, 6:7] * sz + P[:, 7:8] - ty_ref[...]
    dz = P[:, 8:9] * sx + P[:, 9:10] * sy + P[:, 10:11] * sz + P[:, 11:12] - tz_ref[...]
    dist = jnp.sqrt(dx * dx + dy * dy + dz * dz)              # (Bt, N)
    rmse = jnp.mean(dist, axis=-1, keepdims=True)             # (Bt, 1)

    # Pack the three per-batch scalars into one lane-dense output slab.
    lane = jax.lax.broadcasted_iota(jnp.int32, out_ref.shape, 1)
    out_ref[...] = (jnp.where(lane == 0, cos_v, 0.0)
                    + jnp.where(lane == 1, te_v, 0.0)
                    + jnp.where(lane == 2, rmse, 0.0))


def _transformation_loss_pallas(pred_trans, gt_trans, src_kpts, tgt_kpts):
    """pred/gt: (B,4,4); src/tgt keypoints: (B,N,3).  Returns (cos, TE, RMSE), each (B,)."""
    B = pred_trans.shape[0]
    N = src_kpts.shape[1]
    f32 = jnp.float32

    pred_flat = pred_trans.reshape(B, 16).astype(f32)   # free row-major reshape
    gt_flat = gt_trans.reshape(B, 16).astype(f32)

    # Split keypoints into dense coordinate planes (B, N): one HBM pass.
    # TODO(synk): produce keypoints in coordinate-planar layout upstream to
    # eliminate this layout pass entirely.
    src_kpts = src_kpts.astype(f32)
    tgt_kpts = tgt_kpts.astype(f32)
    sx, sy, sz = src_kpts[:, :, 0], src_kpts[:, :, 1], src_kpts[:, :, 2]
    tx, ty, tz = tgt_kpts[:, :, 0], tgt_kpts[:, :, 1], tgt_kpts[:, :, 2]

    # Note: N is kept whole on the lane axis (registration keypoint sets are
    # small); for N >~ 1e5 the point axis would also need tiling.
    bt = _choose_batch_tile(B, N)
    B_pad = _round_up(B, bt)
    if B_pad != B:
        pad = ((0, B_pad - B), (0, 0))
        pred_flat = jnp.pad(pred_flat, pad)
        gt_flat = jnp.pad(gt_flat, pad)
        sx, sy, sz = (jnp.pad(a, pad) for a in (sx, sy, sz))
        tx, ty, tz = (jnp.pad(a, pad) for a in (tx, ty, tz))

    row_spec_16 = pl.BlockSpec((bt, 16), lambda i: (i, 0))
    row_spec_n = pl.BlockSpec((bt, N), lambda i: (i, 0))

    out = pl.pallas_call(
        _transformation_loss_kernel,
        out_shape=jax.ShapeDtypeStruct((B_pad, 128), f32),
        grid=(B_pad // bt,),
        in_specs=[row_spec_16, row_spec_16,
                  row_spec_n, row_spec_n, row_spec_n,
                  row_spec_n, row_spec_n, row_spec_n],
        out_specs=pl.BlockSpec((bt, 128), lambda i: (i, 0)),
        compiler_params=pltpu.CompilerParams(
            dimension_semantics=("parallel",),
            vmem_limit_bytes=32 * 1024 * 1024),
    )(pred_flat, gt_flat, sx, sy, sz, tx, ty, tz)

    return out[:B, 0], out[:B, 1], out[:B, 2]


def _transformation_loss_reference(pred_trans, gt_trans, src_kpts, tgt_kpts):
    """Pure-JAX path (also used as fallback for tiny shapes)."""
    Rp = pred_trans[:, :3, :3].astype(jnp.float32)
    Rg = gt_trans[:, :3, :3].astype(jnp.float32)
    tp = pred_trans[:, :3, 3].astype(jnp.float32)
    tg = gt_trans[:, :3, 3].astype(jnp.float32)
    tr = jnp.sum(Rp * Rg, axis=(1, 2))
    cos_v = jnp.clip(0.5 * (tr - 1.0), -1.0, 1.0)
    te = jnp.linalg.norm(tp - tg, axis=-1) * 100.0
    trans = jnp.einsum('bij,bnj->bni', Rp, src_kpts.astype(jnp.float32)) + tp[:, None, :]
    rmse = jnp.linalg.norm(trans - tgt_kpts.astype(jnp.float32), axis=-1).mean(axis=1)
    return cos_v, te, rmse


class TransformationLoss:
    """JAX/Pallas port of the PyTorch TransformationLoss module (no weights)."""

    def __init__(self, re_thresh, te_thresh):
        self.re_thresh = re_thresh
        self.te_thresh = te_thresh

    def __call__(self, pred_trans, gt_trans, src_kpts, tgt_kpts, inlier_probs):
        # inlier_probs is unused, exactly as in the PyTorch reference.
        batch_size = pred_trans.shape[0]
        n_pts = src_kpts.shape[1]

        if batch_size * n_pts < _PALLAS_MIN_ELEMS:
            cos_v, TE, RMSE = _transformation_loss_reference(
                pred_trans, gt_trans, src_kpts, tgt_kpts)
        else:
            cos_v, TE, RMSE = _transformation_loss_pallas(
                pred_trans, gt_trans, src_kpts, tgt_kpts)

        RE = jnp.arccos(cos_v) * (180.0 / np.pi)

        # Bug-compatible with the PyTorch reference: `torch.where(a) and
        # torch.where(b)` returns the second (non-empty) tuple, so recall only
        # counts elements with TE < te_thresh.
        recall = jnp.sum(TE < self.te_thresh).astype(jnp.float32)

        return (recall * 100.0 / batch_size, RE.mean(), TE.mean(), RMSE.mean())


def _make_transforms(thetas, ts):
    """Rigid transforms: rotation about z by theta, translation ts. -> (B,4,4)"""
    c, s = jnp.cos(thetas), jnp.sin(thetas)
    z = jnp.zeros_like(c)
    o = jnp.ones_like(c)
    R = jnp.stack([jnp.stack([c, -s, z], axis=-1),
                   jnp.stack([s, c, z], axis=-1),
                   jnp.stack([z, z, o], axis=-1)], axis=-2)      # (B,3,3)
    top = jnp.concatenate([R, ts[:, :, None]], axis=-1)          # (B,3,4)
    bottom = jnp.tile(jnp.array([[[0.0, 0.0, 0.0, 1.0]]], dtype=jnp.float32),
                      (thetas.shape[0], 1, 1))
    return jnp.concatenate([top, bottom], axis=1).astype(jnp.float32)


if __name__ == "__main__":
    key = jax.random.PRNGKey(0)
    B, N = 16, 2048
    k1, k2, k3, k4, k5, k6 = jax.random.split(key, 6)

    thetas_p = jax.random.uniform(k1, (B,), minval=-0.3, maxval=0.3)
    thetas_g = jax.random.uniform(k2, (B,), minval=-0.3, maxval=0.3)
    t_p = jax.random.normal(k3, (B, 3)) * 0.1
    t_g = jax.random.normal(k4, (B, 3)) * 0.1

    pred_trans = _make_transforms(thetas_p, t_p)                 # (B,4,4)
    gt_trans = _make_transforms(thetas_g, t_g)                   # (B,4,4)

    src_kpts = jax.random.normal(k5, (B, N, 3), dtype=jnp.float32)
    # targets = ground-truth-transformed sources (so RMSE is meaningful)
    tgt_kpts = (jnp.einsum('bij,bnj->bni', gt_trans[:, :3, :3], src_kpts)
                + gt_trans[:, None, :3, 3]).astype(jnp.float32)
    inlier_probs = jax.random.uniform(k6, (B, N), dtype=jnp.float32)  # unused

    loss = TransformationLoss(re_thresh=15.0, te_thresh=30.0)
    recall, re_mean, te_mean, rmse_mean = loss(
        pred_trans, gt_trans, src_kpts, tgt_kpts, inlier_probs)
    jax.block_until_ready((recall, re_mean, te_mean, rmse_mean))

    # light correctness check against the pure-JAX reference (loose tolerance)
    cos_r, te_r, rmse_r = _transformation_loss_reference(
        pred_trans, gt_trans, src_kpts, tgt_kpts)
    re_r = jnp.arccos(cos_r) * (180.0 / np.pi)
    np.testing.assert_allclose(float(re_mean), float(re_r.mean()), rtol=5e-3, atol=5e-3)
    np.testing.assert_allclose(float(te_mean), float(te_r.mean()), rtol=5e-3, atol=5e-3)
    np.testing.assert_allclose(float(rmse_mean), float(rmse_r.mean()), rtol=5e-3, atol=5e-3)

    print("KERNEL_OK")
</pallas_src>

<mosaic_0001>
module attributes {stable_mosaic.version = 11 : i64} {
  func.func @_transformation_loss_kernel(%arg0: i32, %arg1: memref<8x16xf32, #tpu.memory_space<vmem>>, %arg2: memref<8x16xf32, #tpu.memory_space<vmem>>, %arg3: memref<8x2048xf32, #tpu.memory_space<vmem>>, %arg4: memref<8x2048xf32, #tpu.memory_space<vmem>>, %arg5: memref<8x2048xf32, #tpu.memory_space<vmem>>, %arg6: memref<8x2048xf32, #tpu.memory_space<vmem>>, %arg7: memref<8x2048xf32, #tpu.memory_space<vmem>>, %arg8: memref<8x2048xf32, #tpu.memory_space<vmem>>, %arg9: memref<8x128xf32, #tpu.memory_space<vmem>>) attributes {dimension_semantics = [#tpu.dimension_semantics<parallel>], iteration_bounds = array<i64: 2>, scalar_prefetch = 0 : i64, scratch_operands = 0 : i64, tpu.core_type = #tpu.core_type<tc>, window_params = [{transform_indices = @transform_0, window_bounds = array<i64: 8, 16>}, {transform_indices = @transform_1, window_bounds = array<i64: 8, 16>}, {transform_indices = @transform_2, window_bounds = array<i64: 8, 2048>}, {transform_indices = @transform_3, window_bounds = array<i64: 8, 2048>}, {transform_indices = @transform_4, window_bounds = array<i64: 8, 2048>}, {transform_indices = @transform_5, window_bounds = array<i64: 8, 2048>}, {transform_indices = @transform_6, window_bounds = array<i64: 8, 2048>}, {transform_indices = @transform_7, window_bounds = array<i64: 8, 2048>}, {transform_indices = @transform_8, window_bounds = array<i64: 8, 128>}]} {
    %c0 = arith.constant 0 : index
    %c0_0 = arith.constant 0 : index
    %0 = vector.load %arg1[%c0, %c0_0] : memref<8x16xf32, #tpu.memory_space<vmem>>, vector<8x16xf32>
    %c0_1 = arith.constant 0 : index
    %c0_2 = arith.constant 0 : index
    %1 = vector.load %arg2[%c0_1, %c0_2] : memref<8x16xf32, #tpu.memory_space<vmem>>, vector<8x16xf32>
    %2 = arith.mulf %0, %1 : vector<8x16xf32>
    %3 = vector.extract_strided_slice %2 {offsets = [0, 0], sizes = [8, 1], strides = [1, 1]} : vector<8x16xf32> to vector<8x1xf32>
    %4 = vector.extract_strided_slice %2 {offsets = [0, 1], sizes = [8, 1], strides = [1, 1]} : vector<8x16xf32> to vector<8x1xf32>
    %5 = arith.addf %3, %4 : vector<8x1xf32>
    %6 = vector.extract_strided_slice %2 {offsets = [0, 2], sizes = [8, 1], strides = [1, 1]} : vector<8x16xf32> to vector<8x1xf32>
    %7 = arith.addf %5, %6 : vector<8x1xf32>
    %8 = vector.extract_strided_slice %2 {offsets = [0, 4], sizes = [8, 1], strides = [1, 1]} : vector<8x16xf32> to vector<8x1xf32>
    %9 = arith.addf %7, %8 : vector<8x1xf32>
    %10 = vector.extract_strided_slice %2 {offsets = [0, 5], sizes = [8, 1], strides = [1, 1]} : vector<8x16xf32> to vector<8x1xf32>
    %11 = arith.addf %9, %10 : vector<8x1xf32>
    %12 = vector.extract_strided_slice %2 {offsets = [0, 6], sizes = [8, 1], strides = [1, 1]} : vector<8x16xf32> to vector<8x1xf32>
    %13 = arith.addf %11, %12 : vector<8x1xf32>
    %14 = vector.extract_strided_slice %2 {offsets = [0, 8], sizes = [8, 1], strides = [1, 1]} : vector<8x16xf32> to vector<8x1xf32>
    %15 = arith.addf %13, %14 : vector<8x1xf32>
    %16 = vector.extract_strided_slice %2 {offsets = [0, 9], sizes = [8, 1], strides = [1, 1]} : vector<8x16xf32> to vector<8x1xf32>
    %17 = arith.addf %15, %16 : vector<8x1xf32>
    %18 = vector.extract_strided_slice %2 {offsets = [0, 10], sizes = [8, 1], strides = [1, 1]} : vector<8x16xf32> to vector<8x1xf32>
    %19 = arith.addf %17, %18 : vector<8x1xf32>
    %cst = arith.constant 1.000000e+00 : f32
    %20 = vector.broadcast %cst : f32 to vector<8x1xf32>
    %21 = arith.subf %19, %20 : vector<8x1xf32>
    %cst_3 = arith.constant 5.000000e-01 : f32
    %22 = vector.broadcast %cst_3 : f32 to vector<8x1xf32>
    %23 = arith.mulf %22, %21 : vector<8x1xf32>
    %cst_4 = arith.constant -1.000000e+00 : f32
    %cst_5 = arith.constant 1.000000e+00 : f32
    %24 = vector.broadcast %cst_4 : f32 to vector<8x1xf32>
    %25 = arith.maximumf %24, %23 : vector<8x1xf32>
    %26 = vector.broadcast %cst_5 : f32 to vector<8x1xf32>
    %27 = arith.minimumf %26, %25 : vector<8x1xf32>
    %28 = vector.extract_strided_slice %0 {offsets = [0, 3], sizes = [8, 1], strides = [1, 1]} : vector<8x16xf32> to vector<8x1xf32>
    %29 = vector.extract_strided_slice %1 {offsets = [0, 3], sizes = [8, 1], strides = [1, 1]} : vector<8x16xf32> to vector<8x1xf32>
    %30 = arith.subf %28, %29 : vector<8x1xf32>
    %31 = vector.extract_strided_slice %0 {offsets = [0, 7], sizes = [8, 1], strides = [1, 1]} : vector<8x16xf32> to vector<8x1xf32>
    %32 = vector.extract_strided_slice %1 {offsets = [0, 7], sizes = [8, 1], strides = [1, 1]} : vector<8x16xf32> to vector<8x1xf32>
    %33 = arith.subf %31, %32 : vector<8x1xf32>
    %34 = vector.extract_strided_slice %0 {offsets = [0, 11], sizes = [8, 1], strides = [1, 1]} : vector<8x16xf32> to vector<8x1xf32>
    %35 = vector.extract_strided_slice %1 {offsets = [0, 11], sizes = [8, 1], strides = [1, 1]} : vector<8x16xf32> to vector<8x1xf32>
    %36 = arith.subf %34, %35 : vector<8x1xf32>
    %37 = arith.mulf %30, %30 : vector<8x1xf32>
    %38 = arith.mulf %33, %33 : vector<8x1xf32>
    %39 = arith.addf %37, %38 : vector<8x1xf32>
    %40 = arith.mulf %36, %36 : vector<8x1xf32>
    %41 = arith.addf %39, %40 : vector<8x1xf32>
    %42 = math.sqrt %41 : vector<8x1xf32>
    %cst_6 = arith.constant 1.000000e+02 : f32
    %43 = vector.broadcast %cst_6 : f32 to vector<8x1xf32>
    %44 = arith.mulf %42, %43 : vector<8x1xf32>
    %c0_7 = arith.constant 0 : index
    %c0_8 = arith.constant 0 : index
    %45 = vector.load %arg3[%c0_7, %c0_8] : memref<8x2048xf32, #tpu.memory_space<vmem>>, vector<8x2048xf32>
    %c0_9 = arith.constant 0 : index
    %c0_10 = arith.constant 0 : index
    %46 = vector.load %arg4[%c0_9, %c0_10] : memref<8x2048xf32, #tpu.memory_space<vmem>>, vector<8x2048xf32>
    %c0_11 = arith.constant 0 : index
    %c0_12 = arith.constant 0 : index
    %47 = vector.load %arg5[%c0_11, %c0_12] : memref<8x2048xf32, #tpu.memory_space<vmem>>, vector<8x2048xf32>
    %48 = vector.extract_strided_slice %0 {offsets = [0, 0], sizes = [8, 1], strides = [1, 1]} : vector<8x16xf32> to vector<8x1xf32>
    %49 = vector.broadcast %48 : vector<8x1xf32> to vector<8x2048xf32>
    %50 = arith.mulf %49, %45 : vector<8x2048xf32>
    %51 = vector.extract_strided_slice %0 {offsets = [0, 1], sizes = [8, 1], strides = [1, 1]} : vector<8x16xf32> to vector<8x1xf32>
    %52 = vector.broadcast %51 : vector<8x1xf32> to vector<8x2048xf32>
    %53 = arith.mulf %52, %46 : vector<8x2048xf32>
    %54 = arith.addf %50, %53 : vector<8x2048xf32>
    %55 = vector.extract_strided_slice %0 {offsets = [0, 2], sizes = [8, 1], strides = [1, 1]} : vector<8x16xf32> to vector<8x1xf32>
    %56 = vector.broadcast %55 : vector<8x1xf32> to vector<8x2048xf32>
    %57 = arith.mulf %56, %47 : vector<8x2048xf32>
    %58 = arith.addf %54, %57 : vector<8x2048xf32>
    %59 = vector.extract_strided_slice %0 {offsets = [0, 3], sizes = [8, 1], strides = [1, 1]} : vector<8x16xf32> to vector<8x1xf32>
    %60 = vector.broadcast %59 : vector<8x1xf32> to vector<8x2048xf32>
    %61 = arith.addf %58, %60 : vector<8x2048xf32>
    %c0_13 = arith.constant 0 : index
    %c0_14 = arith.constant 0 : index
    %62 = vector.load %arg6[%c0_13, %c0_14] : memref<8x2048xf32, #tpu.memory_space<vmem>>, vector<8x2048xf32>
    %63 = arith.subf %61, %62 : vector<8x2048xf32>
    %64 = vector.extract_strided_slice %0 {offsets = [0, 4], sizes = [8, 1], strides = [1, 1]} : vector<8x16xf32> to vector<8x1xf32>
    %65 = vector.broadcast %64 : vector<8x1xf32> to vector<8x2048xf32>
    %66 = arith.mulf %65, %45 : vector<8x2048xf32>
    %67 = vector.extract_strided_slice %0 {offsets = [0, 5], sizes = [8, 1], strides = [1, 1]} : vector<8x16xf32> to vector<8x1xf32>
    %68 = vector.broadcast %67 : vector<8x1xf32> to vector<8x2048xf32>
    %69 = arith.mulf %68, %46 : vector<8x2048xf32>
    %70 = arith.addf %66, %69 : vector<8x2048xf32>
    %71 = vector.extract_strided_slice %0 {offsets = [0, 6], sizes = [8, 1], strides = [1, 1]} : vector<8x16xf32> to vector<8x1xf32>
    %72 = vector.broadcast %71 : vector<8x1xf32> to vector<8x2048xf32>
    %73 = arith.mulf %72, %47 : vector<8x2048xf32>
    %74 = arith.addf %70, %73 : vector<8x2048xf32>
    %75 = vector.extract_strided_slice %0 {offsets = [0, 7], sizes = [8, 1], strides = [1, 1]} : vector<8x16xf32> to vector<8x1xf32>
    %76 = vector.broadcast %75 : vector<8x1xf32> to vector<8x2048xf32>
    %77 = arith.addf %74, %76 : vector<8x2048xf32>
    %c0_15 = arith.constant 0 : index
    %c0_16 = arith.constant 0 : index
    %78 = vector.load %arg7[%c0_15, %c0_16] : memref<8x2048xf32, #tpu.memory_space<vmem>>, vector<8x2048xf32>
    %79 = arith.subf %77, %78 : vector<8x2048xf32>
    %80 = vector.extract_strided_slice %0 {offsets = [0, 8], sizes = [8, 1], strides = [1, 1]} : vector<8x16xf32> to vector<8x1xf32>
    %81 = vector.broadcast %80 : vector<8x1xf32> to vector<8x2048xf32>
    %82 = arith.mulf %81, %45 : vector<8x2048xf32>
    %83 = vector.extract_strided_slice %0 {offsets = [0, 9], sizes = [8, 1], strides = [1, 1]} : vector<8x16xf32> to vector<8x1xf32>
    %84 = vector.broadcast %83 : vector<8x1xf32> to vector<8x2048xf32>
    %85 = arith.mulf %84, %46 : vector<8x2048xf32>
    %86 = arith.addf %82, %85 : vector<8x2048xf32>
    %87 = vector.extract_strided_slice %0 {offsets = [0, 10], sizes = [8, 1], strides = [1, 1]} : vector<8x16xf32> to vector<8x1xf32>
    %88 = vector.broadcast %87 : vector<8x1xf32> to vector<8x2048xf32>
    %89 = arith.mulf %88, %47 : vector<8x2048xf32>
    %90 = arith.addf %86, %89 : vector<8x2048xf32>
    %91 = vector.extract_strided_slice %0 {offsets = [0, 11], sizes = [8, 1], strides = [1, 1]} : vector<8x16xf32> to vector<8x1xf32>
    %92 = vector.broadcast %91 : vector<8x1xf32> to vector<8x2048xf32>
    %93 = arith.addf %90, %92 : vector<8x2048xf32>
    %c0_17 = arith.constant 0 : index
    %c0_18 = arith.constant 0 : index
    %94 = vector.load %arg8[%c0_17, %c0_18] : memref<8x2048xf32, #tpu.memory_space<vmem>>, vector<8x2048xf32>
    %95 = arith.subf %93, %94 : vector<8x2048xf32>
    %96 = arith.mulf %63, %63 : vector<8x2048xf32>
    %97 = arith.mulf %79, %79 : vector<8x2048xf32>
    %98 = arith.addf %96, %97 : vector<8x2048xf32>
    %99 = arith.mulf %95, %95 : vector<8x2048xf32>
    %100 = arith.addf %98, %99 : vector<8x2048xf32>
    %101 = math.sqrt %100 : vector<8x2048xf32>
    %cst_19 = arith.constant dense<0.000000e+00> : vector<8xf32>
    %102 = vector.multi_reduction <add>, %101, %cst_19 [1] : vector<8x2048xf32> to vector<8xf32>
    %103 = vector.shape_cast %102 : vector<8xf32> to vector<8x1xf32>
    %cst_20 = arith.constant 2.048000e+03 : f32
    %104 = vector.broadcast %cst_20 : f32 to vector<8x1xf32>
    %105 = arith.divf %103, %104 : vector<8x1xf32>
    %106 = tpu.iota {dimensions = array<i32: 1>} : vector<8x128xi32>
    %c0_i32 = arith.constant 0 : i32
    %107 = vector.broadcast %c0_i32 : i32 to vector<8x128xi32>
    %108 = arith.cmpi eq, %106, %107 : vector<8x128xi32>
    %cst_21 = arith.constant 0.000000e+00 : f32
    %109 = vector.shape_cast %27 : vector<8x1xf32> to vector<8x1xf32>
    %110 = vector.broadcast %109 : vector<8x1xf32> to vector<8x128xf32>
    %111 = vector.broadcast %cst_21 : f32 to vector<8x128xf32>
    %112 = arith.select %108, %110, %111 : vector<8x128xi1>, vector<8x128xf32>
    %c1_i32 = arith.constant 1 : i32
    %113 = vector.broadcast %c1_i32 : i32 to vector<8x128xi32>
    %114 = arith.cmpi eq, %106, %113 : vector<8x128xi32>
    %cst_22 = arith.constant 0.000000e+00 : f32
    %115 = vector.shape_cast %44 : vector<8x1xf32> to vector<8x1xf32>
    %116 = vector.broadcast %115 : vector<8x1xf32> to vector<8x128xf32>
    %117 = vector.broadcast %cst_22 : f32 to vector<8x128xf32>
    %118 = arith.select %114, %116, %117 : vector<8x128xi1>, vector<8x128xf32>
    %119 = arith.addf %112, %118 : vector<8x128xf32>
    %c2_i32 = arith.constant 2 : i32
    %120 = vector.broadcast %c2_i32 : i32 to vector<8x128xi32>
    %121 = arith.cmpi eq, %106, %120 : vector<8x128xi32>
    %cst_23 = arith.constant 0.000000e+00 : f32
    %122 = vector.shape_cast %105 : vector<8x1xf32> to vector<8x1xf32>
    %123 = vector.broadcast %122 : vector<8x1xf32> to vector<8x128xf32>
    %124 = vector.broadcast %cst_23 : f32 to vector<8x128xf32>
    %125 = arith.select %121, %123, %124 : vector<8x128xi1>, vector<8x128xf32>
    %126 = arith.addf %119, %125 : vector<8x128xf32>
    %c0_24 = arith.constant 0 : index
    %c0_25 = arith.constant 0 : index
    %127 = vector.load %arg9[%c0_24, %c0_25] : memref<8x128xf32, #tpu.memory_space<vmem>>, vector<8x128xf32>
    tpu.vector_store %arg9[%c0_24, %c0_25], %126 {strides = array<i32>} : memref<8x128xf32, #tpu.memory_space<vmem>>, vector<8x128xf32>,
    return
  }
  func.func @transform_0(%arg0: i32) -> (i32, i32) {
    %c0_i32 = arith.constant 0 : i32
    %c0_i32_0 = arith.constant 0 : i32
    return %arg0, %c0_i32 : i32, i32
  }
  func.func @transform_1(%arg0: i32) -> (i32, i32) {
    %c0_i32 = arith.constant 0 : i32
    %c0_i32_0 = arith.constant 0 : i32
    return %arg0, %c0_i32 : i32, i32
  }
  func.func @transform_2(%arg0: i32) -> (i32, i32) {
    %c0_i32 = arith.constant 0 : i32
    %c0_i32_0 = arith.constant 0 : i32
    return %arg0, %c0_i32 : i32, i32
  }
  func.func @transform_3(%arg0: i32) -> (i32, i32) {
    %c0_i32 = arith.constant 0 : i32
    %c0_i32_0 = arith.constant 0 : i32
    return %arg0, %c0_i32 : i32, i32
  }
  func.func @transform_4(%arg0: i32) -> (i32, i32) {
    %c0_i32 = arith.constant 0 : i32
    %c0_i32_0 = arith.constant 0 : i32
    return %arg0, %c0_i32 : i32, i32
  }
  func.func @transform_5(%arg0: i32) -> (i32, i32) {
    %c0_i32 = arith.constant 0 : i32
    %c0_i32_0 = arith.constant 0 : i32
    return %arg0, %c0_i32 : i32, i32
  }
  func.func @transform_6(%arg0: i32) -> (i32, i32) {
    %c0_i32 = arith.constant 0 : i32
    %c0_i32_0 = arith.constant 0 : i32
    return %arg0, %c0_i32 : i32, i32
  }
  func.func @transform_7(%arg0: i32) -> (i32, i32) {
    %c0_i32 = arith.constant 0 : i32
    %c0_i32_0 = arith.constant 0 : i32
    return %arg0, %c0_i32 : i32, i32
  }
  func.func @transform_8(%arg0: i32) -> (i32, i32) {
    %c0_i32 = arith.constant 0 : i32
    %c0_i32_0 = arith.constant 0 : i32
    return %arg0, %c0_i32 : i32, i32
  }
}

</mosaic_0001>

<llo_original>
// kernel: tpu_custom_call.1
$region0: #{tpu_custom_call.1}
  #allocation0 [shape = 'u32[]', space=smem, size = 0x4, offset = 0x4, fixed_abs, tag = 'smem constant byte address 0x4 - core index']
  #allocation1 [shape = 'u32[144,128]{1,0:T(1,128)}', space=vmem, size = 0x12000, scoped, tag = 'internal scratch']
  %s0 = inlined_call_operand.hbm [shape: f32[16,16], index: 0, kind: input, shape index: {}]
  %s1 = inlined_call_operand.hbm [shape: f32[16,16], index: 1, kind: input, shape index: {}]
  %s2 = inlined_call_operand.hbm [shape: f32[16,2048], index: 2, kind: input, shape index: {}]
  %s3 = inlined_call_operand.hbm [shape: f32[16,2048], index: 3, kind: input, shape index: {}]
  %s4 = inlined_call_operand.hbm [shape: f32[16,2048], index: 4, kind: input, shape index: {}]
  %s5 = inlined_call_operand.hbm [shape: f32[16,2048], index: 5, kind: input, shape index: {}]
  %s6 = inlined_call_operand.hbm [shape: f32[16,2048], index: 6, kind: input, shape index: {}]
  %s7 = inlined_call_operand.hbm [shape: f32[16,2048], index: 7, kind: input, shape index: {}]
  %s8 = inlined_call_operand.hbm [shape: f32[16,128], index: 8, kind: output, shape index: {}]
  %s9 = sld [smem:[#allocation0]]
  $region97: #{tpu_custom_call.1} parent=0
    _
  %s11 = ssub.s32 1, %s9
  %s12 = scalar_select 0, %s11, %s9
  $region1: #{tpu_custom_call.1} parent=0
    #allocation2 [shape = 'u8[8192]{0}', space=vmem, size = 0x2000, scoped, tag = 'input window, operand 0']
    #allocation3 [shape = 's32[2]{0}', space=sflag, size = 0x8, scoped, tag = 'scoped memory for tpu_custom_call.1']
    #allocation4 [shape = 's32[2]{0}', space=sflag, size = 0x8, scoped, tag = 'scoped memory for tpu_custom_call.1']
    #allocation5 [shape = 'u8[8192]{0}', space=vmem, size = 0x2000, scoped, tag = 'input window, operand 1']
    #allocation6 [shape = 's32[2]{0}', space=sflag, size = 0x8, scoped, tag = 'scoped memory for tpu_custom_call.1']
    #allocation7 [shape = 'u8[131072]{0}', space=vmem, size = 0x20000, scoped, tag = 'input window, operand 2']
    #allocation8 [shape = 'u8[131072]{0}', space=vmem, size = 0x20000, scoped, tag = 'input window, operand 3']
    #allocation9 [shape = 's32[2]{0}', space=sflag, size = 0x8, scoped, tag = 'scoped memory for tpu_custom_call.1']
    #allocation10 [shape = 'u8[131072]{0}', space=vmem, size = 0x20000, scoped, tag = 'input window, operand 4']
    #allocation11 [shape = 'u8[131072]{0}', space=vmem, size = 0x20000, scoped, tag = 'input window, operand 5']
    #allocation12 [shape = 's32[2]{0}', space=sflag, size = 0x8, scoped, tag = 'scoped memory for tpu_custom_call.1']
    #allocation13 [shape = 'u8[131072]{0}', space=vmem, size = 0x20000, scoped, tag = 'input window, operand 6']
    #allocation14 [shape = 'u8[131072]{0}', space=vmem, size = 0x20000, scoped, tag = 'input window, operand 7']
    #allocation15 [shape = 's32[2]{0}', space=sflag, size = 0x8, scoped, tag = 'scoped memory for tpu_custom_call.1']
    #allocation16 [shape = 'u8[8192]{0}', space=vmem, size = 0x2000, scoped, tag = 'output window, operand 0']
    %13 = vsyncpa [#allocation3], 0
    %s14 = scalar_lea.sflag [#allocation3], 1
    %15 = vsyncpa %s14, 0
    %16 = vsyncpa [#allocation6], 0
    %s17 = scalar_lea.sflag [#allocation6], 1
    %18 = vsyncpa %s17, 0
    %19 = vsyncpa [#allocation9], 0
    %s20 = scalar_lea.sflag [#allocation9], 1
    %21 = vsyncpa %s20, 0
    %22 = vsyncpa [#allocation12], 0
    %s23 = scalar_lea.sflag [#allocation12], 1
    %24 = vsyncpa %s23, 0
    %25 = vsyncpa [#allocation15], 0
    %s26 = scalar_lea.sflag [#allocation15], 1
    %27 = vsyncpa %s26, 0
    %28 = vsyncpa [#allocation4], 0
    %s29 = scalar_lea.sflag [#allocation4], 1
    %30 = vsyncpa %s29, 0
    loop: start=0, step=1, limit=4
    $region2: #{tpu_custom_call.1} parent=1 // loop_pre_header
      _
    $region3: #{tpu_custom_call.1} parent=1 // loop_header
      %s32 = sphi 0, %s36
      %p33 = scmp.ge.s32.totalorder %s32, 4
      %s42 = sphi 0, %s44
      %s45 = sphi 0, %s42
      %s46 = sphi 0, %s45
      %s62 = sphi 0, %s46
      %s68 = sphi 0, %s70
      %s71 = sphi 0, %s68
      %s72 = sphi 0, %s71
      %s88 = sphi 0, %s72
      %s94 = sphi 0, %s96
      %s97 = sphi 0, %s94
      %s98 = sphi 0, %s97
      %s114 = sphi 0, %s98
      %s120 = sphi 0, %s122
      %s123 = sphi 0, %s120
      %s124 = sphi 0, %s123
      %s140 = sphi 0, %s124
      %s146 = sphi 0, %s148
      %s149 = sphi 0, %s146
      %s150 = sphi 0, %s149
      %s166 = sphi 0, %s150
      %s172 = sphi 0, %s174
      %s175 = sphi 0, %s172
      %s176 = sphi 0, %s175
      %s192 = sphi 0, %s176
      %s198 = sphi 0, %s200
      %s201 = sphi 0, %s198
      %s202 = sphi 0, %s201
      %s218 = sphi 0, %s202
      %s224 = sphi 0, %s226
      %s227 = sphi 0, %s224
      %s228 = sphi 0, %s227
      %s244 = sphi 0, %s228
      %s250 = sphi 0, %s252
      %s253 = sphi 0, %s250
      %s254 = sphi 0, %s253
      %s270 = sphi 0, %s254
    $region4: #{tpu_custom_call.1} parent=1 // loop_header_branch
      %35 = sbr.rel (%p33) target = $region8
    $region5: #{tpu_custom_call.1} parent=1 // loop_body
      %s37 = ssub.s32 %s32, 1
      %s38 = ssub.s32 %s32, 2
      %s39 = sadd.s32 %s32, 1
      %s40 = ssub.s32 %s32, %s39
      %p41 = scmp.eq.s32.totalorder %s40, 0
      %s43 = sadd.s32 %s42, 1
      %s44 = scalar_select %p41, %s42, %s43
      %p47 = pneg %p41
      %p48 = scmp.eq.s32.totalorder %s32, 1
      %p49 = por %p47, %p48
      %p50 = scmp.ne.s32.totalorder %s42, %s45
      %p51 = scmp.eq.s32.totalorder %s32, 0
      %p52 = por %p50, %p51
      %p53 = scmp.ne.s32.totalorder %s42, %s45
      %p54 = scmp.eq.s32.totalorder %s37, 1
      %p55 = por %p53, %p54
      %p56 = scmp.ne.s32.totalorder %s45, %s46
      %p57 = scmp.eq.s32.totalorder %s37, 0
      %p58 = por %p56, %p57
      %p59 = scmp.ne.s32.totalorder %s45, %s46
      %p60 = scmp.eq.s32.totalorder %s38, 1
      %p61 = por %p59, %p60
      %p63 = scmp.ne.s32.totalorder %s46, %s62
      %p64 = scmp.eq.s32.totalorder %s38, 0
      %p65 = por %p63, %p64
      %s66 = ssub.s32 %s32, %s39
      %p67 = scmp.eq.s32.totalorder %s66, 0
      %s69 = sadd.s32 %s68, 1
      %s70 = scalar_select %p67, %s68, %s69
      %p73 = pneg %p67
      %p74 = scmp.eq.s32.totalorder %s32, 1
      %p75 = por %p73, %p74
      %p76 = scmp.ne.s32.totalorder %s68, %s71
      %p77 = scmp.eq.s32.totalorder %s32, 0
      %p78 = por %p76, %p77
      %p79 = scmp.ne.s32.totalorder %s68, %s71
      %p80 = scmp.eq.s32.totalorder %s37, 1
      %p81 = por %p79, %p80
      %p82 = scmp.ne.s32.totalorder %s71, %s72
      %p83 = scmp.eq.s32.totalorder %s37, 0
      %p84 = por %p82, %p83
      %p85 = scmp.ne.s32.totalorder %s71, %s72
      %p86 = scmp.eq.s32.totalorder %s38, 1
      %p87 = por %p85, %p86
      %p89 = scmp.ne.s32.totalorder %s72, %s88
      %p90 = scmp.eq.s32.totalorder %s38, 0
      %p91 = por %p89, %p90
      %s92 = ssub.s32 %s32, %s39
      %p93 = scmp.eq.s32.totalorder %s92, 0
      %s95 = sadd.s32 %s94, 1
      %s96 = scalar_select %p93, %s94, %s95
      %p99 = pneg %p93
      %p100 = scmp.eq.s32.totalorder %s32, 1
      %p101 = por %p99, %p100
      %p102 = scmp.ne.s32.totalorder %s94, %s97
      %p103 = scmp.eq.s32.totalorder %s32, 0
      %p104 = por %p102, %p103
      %p105 = scmp.ne.s32.totalorder %s94, %s97
      %p106 = scmp.eq.s32.totalorder %s37, 1
      %p107 = por %p105, %p106
      %p108 = scmp.ne.s32.totalorder %s97, %s98
      %p109 = scmp.eq.s32.totalorder %s37, 0
      %p110 = por %p108, %p109
      %p111 = scmp.ne.s32.totalorder %s97, %s98
      %p112 = scmp.eq.s32.totalorder %s38, 1
      %p113 = por %p111, %p112
      %p115 = scmp.ne.s32.totalorder %s98, %s114
      %p116 = scmp.eq.s32.totalorder %s38, 0
      %p117 = por %p115, %p116
      %s118 = ssub.s32 %s32, %s39
      %p119 = scmp.eq.s32.totalorder %s118, 0
      %s121 = sadd.s32 %s120, 1
      %s122 = scalar_select %p119, %s120, %s121
      %p125 = pneg %p119
      %p126 = scmp.eq.s32.totalorder %s32, 1
      %p127 = por %p125, %p126
      %p128 = scmp.ne.s32.totalorder %s120, %s123
      %p129 = scmp.eq.s32.totalorder %s32, 0
      %p130 = por %p128, %p129
      %p131 = scmp.ne.s32.totalorder %s120, %s123
      %p132 = scmp.eq.s32.totalorder %s37, 1
      %p133 = por %p131, %p132
      %p134 = scmp.ne.s32.totalorder %s123, %s124
      %p135 = scmp.eq.s32.totalorder %s37, 0
      %p136 = por %p134, %p135
      %p137 = scmp.ne.s32.totalorder %s123, %s124
      %p138 = scmp.eq.s32.totalorder %s38, 1
      %p139 = por %p137, %p138
      %p141 = scmp.ne.s32.totalorder %s124, %s140
      %p142 = scmp.eq.s32.totalorder %s38, 0
      %p143 = por %p141, %p142
      %s144 = ssub.s32 %s32, %s39
      %p145 = scmp.eq.s32.totalorder %s144, 0
      %s147 = sadd.s32 %s146, 1
      %s148 = scalar_select %p145, %s146, %s147
      %p151 = pneg %p145
      %p152 = scmp.eq.s32.totalorder %s32, 1
      %p153 = por %p151, %p152
      %p154 = scmp.ne.s32.totalorder %s146, %s149
      %p155 = scmp.eq.s32.totalorder %s32, 0
      %p156 = por %p154, %p155
      %p157 = scmp.ne.s32.totalorder %s146, %s149
      %p158 = scmp.eq.s32.totalorder %s37, 1
      %p159 = por %p157, %p158
      %p160 = scmp.ne.s32.totalorder %s149, %s150
      %p161 = scmp.eq.s32.totalorder %s37, 0
      %p162 = por %p160, %p161
      %p163 = scmp.ne.s32.totalorder %s149, %s150
      %p164 = scmp.eq.s32.totalorder %s38, 1
      %p165 = por %p163, %p164
      %p167 = scmp.ne.s32.totalorder %s150, %s166
      %p168 = scmp.eq.s32.totalorder %s38, 0
      %p169 = por %p167, %p168
      %s170 = ssub.s32 %s32, %s39
      %p171 = scmp.eq.s32.totalorder %s170, 0
      %s173 = sadd.s32 %s172, 1
      %s174 = scalar_select %p171, %s172, %s173
      %p177 = pneg %p171
      %p178 = scmp.eq.s32.totalorder %s32, 1
      %p179 = por %p177, %p178
      %p180 = scmp.ne.s32.totalorder %s172, %s175
      %p181 = scmp.eq.s32.totalorder %s32, 0
      %p182 = por %p180, %p181
      %p183 = scmp.ne.s32.totalorder %s172, %s175
      %p184 = scmp.eq.s32.totalorder %s37, 1
      %p185 = por %p183, %p184
      %p186 = scmp.ne.s32.totalorder %s175, %s176
      %p187 = scmp.eq.s32.totalorder %s37, 0
      %p188 = por %p186, %p187
      %p189 = scmp.ne.s32.totalorder %s175, %s176
      %p190 = scmp.eq.s32.totalorder %s38, 1
      %p191 = por %p189, %p190
      %p193 = scmp.ne.s32.totalorder %s176, %s192
      %p194 = scmp.eq.s32.totalorder %s38, 0
      %p195 = por %p193, %p194
      %s196 = ssub.s32 %s32, %s39
      %p197 = scmp.eq.s32.totalorder %s196, 0
      %s199 = sadd.s32 %s198, 1
      %s200 = scalar_select %p197, %s198, %s199
      %p203 = pneg %p197
      %p204 = scmp.eq.s32.totalorder %s32, 1
      %p205 = por %p203, %p204
      %p206 = scmp.ne.s32.totalorder %s198, %s201
      %p207 = scmp.eq.s32.totalorder %s32, 0
      %p208 = por %p206, %p207
      %p209 = scmp.ne.s32.totalorder %s198, %s201
      %p210 = scmp.eq.s32.totalorder %s37, 1
      %p211 = por %p209, %p210
      %p212 = scmp.ne.s32.totalorder %s201, %s202
      %p213 = scmp.eq.s32.totalorder %s37, 0
      %p214 = por %p212, %p213
      %p215 = scmp.ne.s32.totalorder %s201, %s202
      %p216 = scmp.eq.s32.totalorder %s38, 1
      %p217 = por %p215, %p216
      %p219 = scmp.ne.s32.totalorder %s202, %s218
      %p220 = scmp.eq.s32.totalorder %s38, 0
      %p221 = por %p219, %p220
      %s222 = ssub.s32 %s32, %s39
      %p223 = scmp.eq.s32.totalorder %s222, 0
      %s225 = sadd.s32 %s224, 1
      %s226 = scalar_select %p223, %s224, %s225
      %p229 = pneg %p223
      %p230 = scmp.eq.s32.totalorder %s32, 1
      %p231 = por %p229, %p230
      %p232 = scmp.ne.s32.totalorder %s224, %s227
      %p233 = scmp.eq.s32.totalorder %s32, 0
      %p234 = por %p232, %p233
      %p235 = scmp.ne.s32.totalorder %s224, %s227
      %p236 = scmp.eq.s32.totalorder %s37, 1
      %p237 = por %p235, %p236
      %p238 = scmp.ne.s32.totalorder %s227, %s228
      %p239 = scmp.eq.s32.totalorder %s37, 0
      %p240 = por %p238, %p239
      %p241 = scmp.ne.s32.totalorder %s227, %s228
      %p242 = scmp.eq.s32.totalorder %s38, 1
      %p243 = por %p241, %p242
      %p245 = scmp.ne.s32.totalorder %s228, %s244
      %p246 = scmp.eq.s32.totalorder %s38, 0
      %p247 = por %p245, %p246
      %s248 = ssub.s32 %s32, %s39
      %p249 = scmp.eq.s32.totalorder %s248, 0
      %s251 = sadd.s32 %s250, 1
      %s252 = scalar_select %p249, %s250, %s251
      %p255 = pneg %p249
      %p256 = scmp.eq.s32.totalorder %s32, 1
      %p257 = por %p255, %p256
      %p258 = scmp.ne.s32.totalorder %s250, %s253
      %p259 = scmp.eq.s32.totalorder %s32, 0
      %p260 = por %p258, %p259
      %p261 = scmp.ne.s32.totalorder %s250, %s253
      %p262 = scmp.eq.s32.totalorder %s37, 1
      %p263 = por %p261, %p262
      %p264 = scmp.ne.s32.totalorder %s253, %s254
      %p265 = scmp.eq.s32.totalorder %s37, 0
      %p266 = por %p264, %p265
      %p267 = scmp.ne.s32.totalorder %s253, %s254
      %p268 = scmp.eq.s32.totalorder %s38, 1
      %p269 = por %p267, %p268
      %p271 = scmp.ne.s32.totalorder %s254, %s270
      %p272 = scmp.eq.s32.totalorder %s38, 0
      %p273 = por %p271, %p272
      %p274 = scmp.le.s32.totalorder 1, %s32
      %p275 = scmp.lt.s32.totalorder %s32, 3
      %p276 = pnand %p274, %p275
      %p277 = pneg %p276
      // Predicated region
      $region9: #{tpu_custom_call.1} parent=5 // pred_check
        _
      $region10: #{tpu_custom_call.1} parent=5 // pred_check_branch
        %279 = sbr.rel (%p276) target = $region12
      $region11: #{tpu_custom_call.1} parent=5 // pred_region
        %s280 = ssub.s32 %s32, 1
      $region12: #{tpu_custom_call.1} parent=5 // pred_fallthru
        _
      %p281 = scmp.lt.s32.totalorder %s32, 2
      // Predicated region
      $region13: #{tpu_custom_call.1} parent=5 // pred_check
        %p282 = pneg %p281
      $region14: #{tpu_custom_call.1} parent=5 // pred_check_branch
        %284 = sbr.rel (%p282) target = $region16
      $region15: #{tpu_custom_call.1} parent=5 // pred_region
        // Predicated region
        $region17: #{tpu_custom_call.1} parent=15 // pred_check
          %p285 = pneg %p52
        $region18: #{tpu_custom_call.1} parent=15 // pred_check_branch
          %287 = sbr.rel (%p285) target = $region20
        $region19: #{tpu_custom_call.1} parent=15 // pred_region
          %s288 = sand.u32 %s42, 1
          %s289 = scalar_lea.sflag [#allocation3], %s288
          %s290 = sand.u32 %s42, 1
          %s291 = smul.addr %s290, 8
          %s292 = scalar_lea.vmem [#allocation2], %s291
          %s294 = ssub.s32 128, 128
          %295 = vsyncadd %s289, %s294
          %s296 = smul.addr %s32, 128
          %s297 = scalar_lea.hbm %s0, %s296
          %s299 = sshll.u32 %s292, 4
          %s300 = int_to_ptr.vmem [resolvable:$true] %s299
          %302 = dma.hbm_to_vmem [thread:$0]  %s297, 128, %s300, %s289
        $region20: #{tpu_custom_call.1} parent=15 // pred_fallthru
          _
        // Predicated region
        $region21: #{tpu_custom_call.1} parent=15 // pred_check
          %p303 = pneg %p78
        $region22: #{tpu_custom_call.1} parent=15 // pred_check_branch
          %305 = sbr.rel (%p303) target = $region24
        $region23: #{tpu_custom_call.1} parent=15 // pred_region
          %s306 = sand.u32 %s32, 1
          %s307 = scalar_lea.sflag [#allocation6], %s306
          %s308 = sand.u32 %s68, 1
          %s309 = smul.addr %s308, 8
          %s310 = scalar_lea.vmem [#allocation5], %s309
          %s312 = ssub.s32 128, 128
          %313 = vsyncadd %s307, %s312
          %s314 = smul.addr %s32, 128
          %s315 = scalar_lea.hbm %s1, %s314
          %s317 = sshll.u32 %s310, 4
          %s318 = int_to_ptr.vmem [resolvable:$true] %s317
          %320 = dma.hbm_to_vmem [thread:$0]  %s315, 128, %s318, %s307
        $region24: #{tpu_custom_call.1} parent=15 // pred_fallthru
          _
        // Predicated region
        $region25: #{tpu_custom_call.1} parent=15 // pred_check
          %p321 = pneg %p104
        $region26: #{tpu_custom_call.1} parent=15 // pred_check_branch
          %323 = sbr.rel (%p321) target = $region28
        $region27: #{tpu_custom_call.1} parent=15 // pred_region
          %s324 = sand.u32 %s32, 1
          %s325 = scalar_lea.sflag [#allocation6], %s324
          %s326 = sand.u32 %s94, 1
          %s327 = smul.addr %s326, 128
          %s328 = scalar_lea.vmem [#allocation7], %s327
          %s330 = ssub.s32 2048, 2048
          %331 = vsyncadd %s325, %s330
          %s332 = smul.addr %s32, 16
          %s333 = smul.addr %s332, 128
          %s334 = scalar_lea.hbm %s2, %s333
          %s336 = sshll.u32 %s328, 4
          %s337 = int_to_ptr.vmem [resolvable:$true] %s336
          %339 = dma.hbm_to_vmem [thread:$0]  %s334, 2048, %s337, %s325
        $region28: #{tpu_custom_call.1} parent=15 // pred_fallthru
          _
        // Predicated region
        $region29: #{tpu_custom_call.1} parent=15 // pred_check
          %p340 = pneg %p130
        $region30: #{tpu_custom_call.1} parent=15 // pred_check_branch
          %342 = sbr.rel (%p340) target = $region32
        $region31: #{tpu_custom_call.1} parent=15 // pred_region
          %s343 = sand.u32 %s32, 1
          %s344 = scalar_lea.sflag [#allocation9], %s343
          %s345 = sand.u32 %s120, 1
          %s346 = smul.addr %s345, 128
          %s347 = scalar_lea.vmem [#allocation8], %s346
          %s349 = ssub.s32 2048, 2048
          %350 = vsyncadd %s344, %s349
          %s351 = smul.addr %s32, 16
          %s352 = smul.addr %s351, 128
          %s353 = scalar_lea.hbm %s3, %s352
          %s355 = sshll.u32 %s347, 4
          %s356 = int_to_ptr.vmem [resolvable:$true] %s355
          %358 = dma.hbm_to_vmem [thread:$0]  %s353, 2048, %s356, %s344
        $region32: #{tpu_custom_call.1} parent=15 // pred_fallthru
          _
        // Predicated region
        $region33: #{tpu_custom_call.1} parent=15 // pred_check
          %p359 = pneg %p156
        $region34: #{tpu_custom_call.1} parent=15 // pred_check_branch
          %361 = sbr.rel (%p359) target = $region36
        $region35: #{tpu_custom_call.1} parent=15 // pred_region
          %s362 = sand.u32 %s32, 1
          %s363 = scalar_lea.sflag [#allocation9], %s362
          %s364 = sand.u32 %s146, 1
          %s365 = smul.addr %s364, 128
          %s366 = scalar_lea.vmem [#allocation10], %s365
          %s368 = ssub.s32 2048, 2048
          %369 = vsyncadd %s363, %s368
          %s370 = smul.addr %s32, 16
          %s371 = smul.addr %s370, 128
          %s372 = scalar_lea.hbm %s4, %s371
          %s374 = sshll.u32 %s366, 4
          %s375 = int_to_ptr.vmem [resolvable:$true] %s374
          %377 = dma.hbm_to_vmem [thread:$0]  %s372, 2048, %s375, %s363
        $region36: #{tpu_custom_call.1} parent=15 // pred_fallthru
          _
        // Predicated region
        $region37: #{tpu_custom_call.1} parent=15 // pred_check
          %p378 = pneg %p182
        $region38: #{tpu_custom_call.1} parent=15 // pred_check_branch
          %380 = sbr.rel (%p378) target = $region40
        $region39: #{tpu_custom_call.1} parent=15 // pred_region
          %s381 = sand.u32 %s32, 1
          %s382 = scalar_lea.sflag [#allocation12], %s381
          %s383 = sand.u32 %s172, 1
          %s384 = smul.addr %s383, 128
          %s385 = scalar_lea.vmem [#allocation11], %s384
          %s387 = ssub.s32 2048, 2048
          %388 = vsyncadd %s382, %s387
          %s389 = smul.addr %s32, 16
          %s390 = smul.addr %s389, 128
          %s391 = scalar_lea.hbm %s5, %s390
          %s393 = sshll.u32 %s385, 4
          %s394 = int_to_ptr.vmem [resolvable:$true] %s393
          %396 = dma.hbm_to_vmem [thread:$0]  %s391, 2048, %s394, %s382
        $region40: #{tpu_custom_call.1} parent=15 // pred_fallthru
          _
        // Predicated region
        $region41: #{tpu_custom_call.1} parent=15 // pred_check
          %p397 = pneg %p208
        $region42: #{tpu_custom_call.1} parent=15 // pred_check_branch
          %399 = sbr.rel (%p397) target = $region44
        $region43: #{tpu_custom_call.1} parent=15 // pred_region
          %s400 = sand.u32 %s32, 1
          %s401 = scalar_lea.sflag [#allocation12], %s400
          %s402 = sand.u32 %s198, 1
          %s403 = smul.addr %s402, 128
          %s404 = scalar_lea.vmem [#allocation13], %s403
          %s406 = ssub.s32 2048, 2048
          %407 = vsyncadd %s401, %s406
          %s408 = smul.addr %s32, 16
          %s409 = smul.addr %s408, 128
          %s410 = scalar_lea.hbm %s6, %s409
          %s412 = sshll.u32 %s404, 4
          %s413 = int_to_ptr.vmem [resolvable:$true] %s412
          %415 = dma.hbm_to_vmem [thread:$0]  %s410, 2048, %s413, %s401
        $region44: #{tpu_custom_call.1} parent=15 // pred_fallthru
          _
        // Predicated region
        $region45: #{tpu_custom_call.1} parent=15 // pred_check
          %p416 = pneg %p234
        $region46: #{tpu_custom_call.1} parent=15 // pred_check_branch
          %418 = sbr.rel (%p416) target = $region48
        $region47: #{tpu_custom_call.1} parent=15 // pred_region
          %s419 = sand.u32 %s224, 1
          %s420 = scalar_lea.sflag [#allocation15], %s419
          %s421 = sand.u32 %s224, 1
          %s422 = smul.addr %s421, 128
          %s423 = scalar_lea.vmem [#allocation14], %s422
          %s425 = ssub.s32 2048, 2048
          %426 = vsyncadd %s420, %s425
          %s427 = smul.addr %s32, 16
          %s428 = smul.addr %s427, 128
          %s429 = scalar_lea.hbm %s7, %s428
          %s431 = sshll.u32 %s423, 4
          %s432 = int_to_ptr.vmem [resolvable:$true] %s431
          %434 = dma.hbm_to_vmem [thread:$0]  %s429, 2048, %s432, %s420
        $region48: #{tpu_custom_call.1} parent=15 // pred_fallthru
          _
      $region16: #{tpu_custom_call.1} parent=5 // pred_fallthru
        _
      %p435 = scmp.le.s32.totalorder 1, %s32
      %p436 = scmp.lt.s32.totalorder %s32, 3
      %p437 = pnand %p435, %p436
      %p438 = pneg %p437
      // Predicated region
      $region49: #{tpu_custom_call.1} parent=5 // pred_check
        _
      $region50: #{tpu_custom_call.1} parent=5 // pred_check_branch
        %440 = sbr.rel (%p437) target = $region52
      $region51: #{tpu_custom_call.1} parent=5 // pred_region
        %s441 = ssub.s32 %s32, 1
        %s442 = sand.u32 %s45, 1
        %s443 = scalar_lea.sflag [#allocation3], %s442
        %s444 = sand.u32 %s45, 1
        %s445 = smul.addr %s444, 8
        %s446 = scalar_lea.vmem [#allocation2], %s445
        // Predicated region
        $region53: #{tpu_custom_call.1} parent=51 // pred_check
          %p447 = pneg %p58
        $region54: #{tpu_custom_call.1} parent=51 // pred_check_branch
          %449 = sbr.rel (%p447) target = $region56
        $region55: #{tpu_custom_call.1} parent=51 // pred_region
          %450 = dma.done %s443, 128
        $region56: #{tpu_custom_call.1} parent=51 // pred_fallthru
          _
        %s451 = sand.u32 %s37, 1
        %s452 = scalar_lea.sflag [#allocation6], %s451
        %s453 = sand.u32 %s71, 1
        %s454 = smul.addr %s453, 8
        %s455 = scalar_lea.vmem [#allocation5], %s454
        // Predicated region
        $region57: #{tpu_custom_call.1} parent=51 // pred_check
          %p456 = pneg %p84
        $region58: #{tpu_custom_call.1} parent=51 // pred_check_branch
          %458 = sbr.rel (%p456) target = $region60
        $region59: #{tpu_custom_call.1} parent=51 // pred_region
          %459 = dma.done %s452, 128
        $region60: #{tpu_custom_call.1} parent=51 // pred_fallthru
          _
        %s460 = sand.u32 %s37, 1
        %s461 = scalar_lea.sflag [#allocation6], %s460
        %s462 = sand.u32 %s97, 1
        %s463 = smul.addr %s462, 128
        %s464 = scalar_lea.vmem [#allocation7], %s463
        // Predicated region
        $region61: #{tpu_custom_call.1} parent=51 // pred_check
          %p465 = pneg %p110
        $region62: #{tpu_custom_call.1} parent=51 // pred_check_branch
          %467 = sbr.rel (%p465) target = $region64
        $region63: #{tpu_custom_call.1} parent=51 // pred_region
          %468 = dma.done %s461, 2048
        $region64: #{tpu_custom_call.1} parent=51 // pred_fallthru
          _
        %s469 = sand.u32 %s37, 1
        %s470 = scalar_lea.sflag [#allocation9], %s469
        %s471 = sand.u32 %s123, 1
        %s472 = smul.addr %s471, 128
        %s473 = scalar_lea.vmem [#allocation8], %s472
        // Predicated region
        $region65: #{tpu_custom_call.1} parent=51 // pred_check
          %p474 = pneg %p136
        $region66: #{tpu_custom_call.1} parent=51 // pred_check_branch
          %476 = sbr.rel (%p474) target = $region68
        $region67: #{tpu_custom_call.1} parent=51 // pred_region
          %477 = dma.done %s470, 2048
        $region68: #{tpu_custom_call.1} parent=51 // pred_fallthru
          _
        %s478 = sand.u32 %s37, 1
        %s479 = scalar_lea.sflag [#allocation9], %s478
        %s480 = sand.u32 %s149, 1
        %s481 = smul.addr %s480, 128
        %s482 = scalar_lea.vmem [#allocation10], %s481
        // Predicated region
        $region69: #{tpu_custom_call.1} parent=51 // pred_check
          %p483 = pneg %p162
        $region70: #{tpu_custom_call.1} parent=51 // pred_check_branch
          %485 = sbr.rel (%p483) target = $region72
        $region71: #{tpu_custom_call.1} parent=51 // pred_region
          %486 = dma.done %s479, 2048
        $region72: #{tpu_custom_call.1} parent=51 // pred_fallthru
          _
        %s487 = sand.u32 %s37, 1
        %s488 = scalar_lea.sflag [#allocation12], %s487
        %s489 = sand.u32 %s175, 1
        %s490 = smul.addr %s489, 128
        %s491 = scalar_lea.vmem [#allocation11], %s490
        // Predicated region
        $region73: #{tpu_custom_call.1} parent=51 // pred_check
          %p492 = pneg %p188
        $region74: #{tpu_custom_call.1} parent=51 // pred_check_branch
          %494 = sbr.rel (%p492) target = $region76
        $region75: #{tpu_custom_call.1} parent=51 // pred_region
          %495 = dma.done %s488, 2048
        $region76: #{tpu_custom_call.1} parent=51 // pred_fallthru
          _
        %s496 = sand.u32 %s37, 1
        %s497 = scalar_lea.sflag [#allocation12], %s496
        %s498 = sand.u32 %s201, 1
        %s499 = smul.addr %s498, 128
        %s500 = scalar_lea.vmem [#allocation13], %s499
        // Predicated region
        $region77: #{tpu_custom_call.1} parent=51 // pred_check
          %p501 = pneg %p214
        $region78: #{tpu_custom_call.1} parent=51 // pred_check_branch
          %503 = sbr.rel (%p501) target = $region80
        $region79: #{tpu_custom_call.1} parent=51 // pred_region
          %504 = dma.done %s497, 2048
        $region80: #{tpu_custom_call.1} parent=51 // pred_fallthru
          _
        %s505 = sand.u32 %s227, 1
        %s506 = scalar_lea.sflag [#allocation15], %s505
        %s507 = sand.u32 %s227, 1
        %s508 = smul.addr %s507, 128
        %s509 = scalar_lea.vmem [#allocation14], %s508
        // Predicated region
        $region81: #{tpu_custom_call.1} parent=51 // pred_check
          %p510 = pneg %p240
        $region82: #{tpu_custom_call.1} parent=51 // pred_check_branch
          %512 = sbr.rel (%p510) target = $region84
        $region83: #{tpu_custom_call.1} parent=51 // pred_region
          %513 = dma.done %s506, 2048
        $region84: #{tpu_custom_call.1} parent=51 // pred_fallthru
          _
        %s514 = sand.u32 %s45, 1
        %s515 = scalar_lea.sflag [#allocation3], %s514
        %s516 = sand.u32 %s45, 1
        %s517 = smul.addr %s516, 8
        %s518 = scalar_lea.vmem [#allocation2], %s517
        %p519 = pneg %p58
        %p520 = pneg %p55
        %s521 = sand.u32 %s37, 1
        %s522 = scalar_lea.sflag [#allocation6], %s521
        %s523 = sand.u32 %s71, 1
        %s524 = smul.addr %s523, 8
        %s525 = scalar_lea.vmem [#allocation5], %s524
        %p526 = pneg %p84
        %p527 = pneg %p81
        %s528 = sand.u32 %s37, 1
        %s529 = scalar_lea.sflag [#allocation6], %s528
        %s530 = sand.u32 %s97, 1
        %s531 = smul.addr %s530, 128
        %s532 = scalar_lea.vmem [#allocation7], %s531
        %p533 = pneg %p110
        %p534 = pneg %p107
        %s535 = sand.u32 %s37, 1
        %s536 = scalar_lea.sflag [#allocation9], %s535
        %s537 = sand.u32 %s123, 1
        %s538 = smul.addr %s537, 128
        %s539 = scalar_lea.vmem [#allocation8], %s538
        %p540 = pneg %p136
        %p541 = pneg %p133
        %s542 = sand.u32 %s37, 1
        %s543 = scalar_lea.sflag [#allocation9], %s542
        %s544 = sand.u32 %s149, 1
        %s545 = smul.addr %s544, 128
        %s546 = scalar_lea.vmem [#allocation10], %s545
        %p547 = pneg %p162
        %p548 = pneg %p159
        %s549 = sand.u32 %s37, 1
        %s550 = scalar_lea.sflag [#allocation12], %s549
        %s551 = sand.u32 %s175, 1
        %s552 = smul.addr %s551, 128
        %s553 = scalar_lea.vmem [#allocation11], %s552
        %p554 = pneg %p188
        %p555 = pneg %p185
        %s556 = sand.u32 %s37, 1
        %s557 = scalar_lea.sflag [#allocation12], %s556
        %s558 = sand.u32 %s201, 1
        %s559 = smul.addr %s558, 128
        %s560 = scalar_lea.vmem [#allocation13], %s559
        %p561 = pneg %p214
        %p562 = pneg %p211
        %s563 = sand.u32 %s227, 1
        %s564 = scalar_lea.sflag [#allocation15], %s563
        %s565 = sand.u32 %s227, 1
        %s566 = smul.addr %s565, 128
        %s567 = scalar_lea.vmem [#allocation14], %s566
        %p568 = pneg %p240
        %p569 = pneg %p237
        %p570 = pneg %p266
        %p571 = pneg %p263
        %s572 = sand.u32 %s253, 1
        %s573 = scalar_lea.sflag [#allocation4], %s572
        %s574 = sand.u32 %s253, 1
        %s575 = smul.addr %s574, 8
        %s576 = scalar_lea.vmem [#allocation16], %s575
        %v577 = vld [vmem:[%s446] sm:$0xff]
        %v578 = vld [vmem:[%s455] sm:$0xff]
        %v579 = vmul.f32 %v577, %v578
        %581 = vrot.lane.b32.xlu0 %v579, 127
        %v582 = vpop.permute.xlu0 %581
        %v584 = vadd.f32 %v579, %v582
        %585 = vrot.lane.b32.xlu0 %v579, 126
        %v586 = vpop.permute.xlu0 %585
        %v588 = vadd.f32 %v584, %v586
        %589 = vrot.lane.b32.xlu0 %v579, 124
        %v590 = vpop.permute.xlu0 %589
        %v592 = vadd.f32 %v588, %v590
        %593 = vrot.lane.b32.xlu0 %v579, 123
        %v594 = vpop.permute.xlu0 %593
        %v596 = vadd.f32 %v592, %v594
        %597 = vrot.lane.b32.xlu0 %v579, 122
        %v598 = vpop.permute.xlu0 %597
        %v600 = vadd.f32 %v596, %v598
        %601 = vrot.lane.b32.xlu0 %v579, 120
        %v602 = vpop.permute.xlu0 %601
        %v604 = vadd.f32 %v600, %v602
        %605 = vrot.lane.b32.xlu0 %v579, 119
        %v606 = vpop.permute.xlu0 %605
        %v608 = vadd.f32 %v604, %v606
        %609 = vrot.lane.b32.xlu0 %v579, 118
        %v610 = vpop.permute.xlu0 %609
        %v612 = vadd.f32 %v608, %v610
        %v613 = vsub.f32 %v612, 1.0
        %v614 = vmul.f32 %v613, 0.5
        %v615 = vmax.f32 %v614, -1.0
        %v616 = vmin.f32 %v615, 1.0
        %v617 = vsub.f32 %v577, %v578
        %v618 = vmul.f32 %v617, %v617
        %620 = vrot.lane.b32.xlu0 %v618, 124
        %v621 = vpop.permute.xlu0 %620
        %v623 = vadd.f32 %v618, %v621
        %624 = vrot.lane.b32.xlu0 %v618, 120
        %v625 = vpop.permute.xlu0 %624
        %v627 = vadd.f32 %v623, %v625
        %v628 = vrsqrt.pop %v627
        %v629 = vmul.f32 %v627, %v628
        %vm630 = vcmp.eq.f32.partialorder %v627, inf
        %v631 = vsel %vm630, %v627, %v629
        %vm632 = vcmp.eq.f32.partialorder %v627, 0.0
        %v633 = vand.u32 %v627, 2147483648
        %v634 = vsel %vm632, %v633, %v631
        %v635 = vmul.f32 %v634, 100.0
        %v636 = vld [vmem:[%s464] sm:$0xff]
        %v637 = vld [vmem:[%s464 + $0x8] sm:$0xff]
        %v638 = vld [vmem:[%s464 + $0x10] sm:$0xff]
        %v639 = vld [vmem:[%s464 + $0x18] sm:$0xff]
        %v640 = vld [vmem:[%s464 + $0x20] sm:$0xff]
        %v641 = vld [vmem:[%s464 + $0x28] sm:$0xff]
        %v642 = vld [vmem:[%s464 + $0x30] sm:$0xff]
        %v643 = vld [vmem:[%s464 + $0x38] sm:$0xff]
        %v644 = vld [vmem:[%s464 + $0x40] sm:$0xff]
        %v645 = vld [vmem:[%s464 + $0x48] sm:$0xff]
        %v646 = vld [vmem:[%s464 + $0x50] sm:$0xff]
        %v647 = vld [vmem:[%s464 + $0x58] sm:$0xff]
        %v648 = vld [vmem:[%s464 + $0x60] sm:$0xff]
        %v649 = vld [vmem:[%s464 + $0x68] sm:$0xff]
        %v650 = vld [vmem:[%s464 + $0x70] sm:$0xff]
        %v651 = vld [vmem:[%s464 + $0x78] sm:$0xff]
        %v652 = vld [vmem:[%s473] sm:$0xff]
        %v653 = vld [vmem:[%s473 + $0x8] sm:$0xff]
        %v654 = vld [vmem:[%s473 + $0x10] sm:$0xff]
        %v655 = vld [vmem:[%s473 + $0x18] sm:$0xff]
        %v656 = vld [vmem:[%s473 + $0x20] sm:$0xff]
        %v657 = vld [vmem:[%s473 + $0x28] sm:$0xff]
        %v658 = vld [vmem:[%s473 + $0x30] sm:$0xff]
        %v659 = vld [vmem:[%s473 + $0x38] sm:$0xff]
        %v660 = vld [vmem:[%s473 + $0x40] sm:$0xff]
        %v661 = vld [vmem:[%s473 + $0x48] sm:$0xff]
        %v662 = vld [vmem:[%s473 + $0x50] sm:$0xff]
        %v663 = vld [vmem:[%s473 + $0x58] sm:$0xff]
        %v664 = vld [vmem:[%s473 + $0x60] sm:$0xff]
        %v665 = vld [vmem:[%s473 + $0x68] sm:$0xff]
        %v666 = vld [vmem:[%s473 + $0x70] sm:$0xff]
        %v667 = vld [vmem:[%s473 + $0x78] sm:$0xff]
        %v668 = vld [vmem:[%s482] sm:$0xff]
        %v669 = vld [vmem:[%s482 + $0x8] sm:$0xff]
        %v670 = vld [vmem:[%s482 + $0x10] sm:$0xff]
        %v671 = vld [vmem:[%s482 + $0x18] sm:$0xff]
        %v672 = vld [vmem:[%s482 + $0x20] sm:$0xff]
        %v673 = vld [vmem:[%s482 + $0x28] sm:$0xff]
        %v674 = vld [vmem:[%s482 + $0x30] sm:$0xff]
        %v675 = vld [vmem:[%s482 + $0x38] sm:$0xff]
        %v676 = vld [vmem:[%s482 + $0x40] sm:$0xff]
        %v677 = vld [vmem:[%s482 + $0x48] sm:$0xff]
        %v678 = vld [vmem:[%s482 + $0x50] sm:$0xff]
        %v679 = vld [vmem:[%s482 + $0x58] sm:$0xff]
        %v680 = vld [vmem:[%s482 + $0x60] sm:$0xff]
        %v681 = vld [vmem:[%s482 + $0x68] sm:$0xff]
        %v682 = vld [vmem:[%s482 + $0x70] sm:$0xff]
        %v683 = vld [vmem:[%s482 + $0x78] sm:$0xff]
        %685 = vset.pattern.permute.xlu0 0
        %686 = vperm.xlu0 %685, %v577
        %v687 = vpop.permute.xlu0 %686
        %v689 = vmul.f32 %v687, %v636
        %v690 = vmul.f32 %v687, %v637
        %v691 = vmul.f32 %v687, %v638
        %v692 = vmul.f32 %v687, %v639
        %v693 = vmul.f32 %v687, %v640
        %v694 = vmul.f32 %v687, %v641
        %v695 = vmul.f32 %v687, %v642
        %v696 = vmul.f32 %v687, %v643
        %v697 = vmul.f32 %v687, %v644
        %v698 = vmul.f32 %v687, %v645
        %v699 = vmul.f32 %v687, %v646
        %v700 = vmul.f32 %v687, %v647
        %v701 = vmul.f32 %v687, %v648
        %v702 = vmul.f32 %v687, %v649
        %v703 = vmul.f32 %v687, %v650
        %v704 = vmul.f32 %v687, %v651
        %705 = vset.pattern.permute.xlu0 1
        %706 = vperm.xlu0 %705, %v577
        %v707 = vpop.permute.xlu0 %706
        %v709 = vmul.f32 %v707, %v652
        %v710 = vmul.f32 %v707, %v653
        %v711 = vmul.f32 %v707, %v654
        %v712 = vmul.f32 %v707, %v655
        %v713 = vmul.f32 %v707, %v656
        %v714 = vmul.f32 %v707, %v657
        %v715 = vmul.f32 %v707, %v658
        %v716 = vmul.f32 %v707, %v659
        %v717 = vmul.f32 %v707, %v660
        %v718 = vmul.f32 %v707, %v661
        %v719 = vmul.f32 %v707, %v662
        %v720 = vmul.f32 %v707, %v663
        %v721 = vmul.f32 %v707, %v664
        %v722 = vmul.f32 %v707, %v665
        %v723 = vmul.f32 %v707, %v666
        %v724 = vmul.f32 %v707, %v667
        %v725 = vadd.f32 %v689, %v709
        %v726 = vadd.f32 %v690, %v710
        %v727 = vadd.f32 %v691, %v711
        %v728 = vadd.f32 %v692, %v712
        %v729 = vadd.f32 %v693, %v713
        %v730 = vadd.f32 %v694, %v714
        %v731 = vadd.f32 %v695, %v715
        %v732 = vadd.f32 %v696, %v716
        %v733 = vadd.f32 %v697, %v717
        %v734 = vadd.f32 %v698, %v718
        %v735 = vadd.f32 %v699, %v719
        %v736 = vadd.f32 %v700, %v720
        %v737 = vadd.f32 %v701, %v721
        %v738 = vadd.f32 %v702, %v722
        %v739 = vadd.f32 %v703, %v723
        %v740 = vadd.f32 %v704, %v724
        %741 = vset.pattern.permute.xlu0 2
        %742 = vperm.xlu0 %741, %v577
        %v743 = vpop.permute.xlu0 %742
        %v745 = vmul.f32 %v743, %v668
        %v746 = vmul.f32 %v743, %v669
        %v747 = vmul.f32 %v743, %v670
        %v748 = vmul.f32 %v743, %v671
        %v749 = vmul.f32 %v743, %v672
        %v750 = vmul.f32 %v743, %v673
        %v751 = vmul.f32 %v743, %v674
        %v752 = vmul.f32 %v743, %v675
        %v753 = vmul.f32 %v743, %v676
        %v754 = vmul.f32 %v743, %v677
        %v755 = vmul.f32 %v743, %v678
        %v756 = vmul.f32 %v743, %v679
        %v757 = vmul.f32 %v743, %v680
        %v758 = vmul.f32 %v743, %v681
        %v759 = vmul.f32 %v743, %v682
        %v760 = vmul.f32 %v743, %v683
        %v761 = vadd.f32 %v725, %v745
        %v762 = vadd.f32 %v726, %v746
        %v763 = vadd.f32 %v727, %v747
        %v764 = vadd.f32 %v728, %v748
        %v765 = vadd.f32 %v729, %v749
        %v766 = vadd.f32 %v730, %v750
        %v767 = vadd.f32 %v731, %v751
        %v768 = vadd.f32 %v732, %v752
        %v769 = vadd.f32 %v733, %v753
        %v770 = vadd.f32 %v734, %v754
        %v771 = vadd.f32 %v735, %v755
        %v772 = vadd.f32 %v736, %v756
        %v773 = vadd.f32 %v737, %v757
        %v774 = vadd.f32 %v738, %v758
        %v775 = vadd.f32 %v739, %v759
        %v776 = vadd.f32 %v740, %v760
        %777 = vset.pattern.permute.xlu0 3
        %778 = vperm.xlu0 %777, %v577
        %v779 = vpop.permute.xlu0 %778
        %v781 = vadd.f32 %v761, %v779
        %v782 = vadd.f32 %v762, %v779
        %v783 = vadd.f32 %v763, %v779
        %v784 = vadd.f32 %v764, %v779
        %v785 = vadd.f32 %v765, %v779
        %v786 = vadd.f32 %v766, %v779
        %v787 = vadd.f32 %v767, %v779
        %v788 = vadd.f32 %v768, %v779
        %v789 = vadd.f32 %v769, %v779
        %v790 = vadd.f32 %v770, %v779
        %v791 = vadd.f32 %v771, %v779
        %v792 = vadd.f32 %v772, %v779
        %v793 = vadd.f32 %v773, %v779
        %v794 = vadd.f32 %v774, %v779
        %v795 = vadd.f32 %v775, %v779
        %v796 = vadd.f32 %v776, %v779
        %v797 = vld [vmem:[%s491] sm:$0xff]
        %v798 = vld [vmem:[%s491 + $0x8] sm:$0xff]
        %v799 = vld [vmem:[%s491 + $0x10] sm:$0xff]
        %v800 = vld [vmem:[%s491 + $0x18] sm:$0xff]
        %v801 = vld [vmem:[%s491 + $0x20] sm:$0xff]
        %v802 = vld [vmem:[%s491 + $0x28] sm:$0xff]
        %v803 = vld [vmem:[%s491 + $0x30] sm:$0xff]
        %v804 = vld [vmem:[%s491 + $0x38] sm:$0xff]
        %v805 = vld [vmem:[%s491 + $0x40] sm:$0xff]
        %v806 = vld [vmem:[%s491 + $0x48] sm:$0xff]
        %v807 = vld [vmem:[%s491 + $0x50] sm:$0xff]
        %v808 = vld [vmem:[%s491 + $0x58] sm:$0xff]
        %v809 = vld [vmem:[%s491 + $0x60] sm:$0xff]
        %v810 = vld [vmem:[%s491 + $0x68] sm:$0xff]
        %v811 = vld [vmem:[%s491 + $0x70] sm:$0xff]
        %v812 = vld [vmem:[%s491 + $0x78] sm:$0xff]
        %v813 = vsub.f32 %v781, %v797
        %v814 = vsub.f32 %v782, %v798
        %v815 = vsub.f32 %v783, %v799
        %v816 = vsub.f32 %v784, %v800
        %v817 = vsub.f32 %v785, %v801
        %v818 = vsub.f32 %v786, %v802
        %v819 = vsub.f32 %v787, %v803
        %v820 = vsub.f32 %v788, %v804
        %v821 = vsub.f32 %v789, %v805
        %v822 = vsub.f32 %v790, %v806
        %v823 = vsub.f32 %v791, %v807
        %v824 = vsub.f32 %v792, %v808
        %v825 = vsub.f32 %v793, %v809
        %v826 = vsub.f32 %v794, %v810
        %v827 = vsub.f32 %v795, %v811
        %v828 = vsub.f32 %v796, %v812
        %829 = vset.pattern.permute.xlu0 4
        %830 = vperm.xlu0 %829, %v577
        %v831 = vpop.permute.xlu0 %830
        %v833 = vmul.f32 %v831, %v636
        %v834 = vmul.f32 %v831, %v637
        %v835 = vmul.f32 %v831, %v638
        %v836 = vmul.f32 %v831, %v639
        %v837 = vmul.f32 %v831, %v640
        %v838 = vmul.f32 %v831, %v641
        %v839 = vmul.f32 %v831, %v642
        %v840 = vmul.f32 %v831, %v643
        %v841 = vmul.f32 %v831, %v644
        %v842 = vmul.f32 %v831, %v645
        %v843 = vmul.f32 %v831, %v646
        %v844 = vmul.f32 %v831, %v647
        %v845 = vmul.f32 %v831, %v648
        %v846 = vmul.f32 %v831, %v649
        %v847 = vmul.f32 %v831, %v650
        %v848 = vmul.f32 %v831, %v651
        %849 = vset.pattern.permute.xlu0 5
        %850 = vperm.xlu0 %849, %v577
        %v851 = vpop.permute.xlu0 %850
        %v853 = vmul.f32 %v851, %v652
        %v854 = vmul.f32 %v851, %v653
        %v855 = vmul.f32 %v851, %v654
        %v856 = vmul.f32 %v851, %v655
        %v857 = vmul.f32 %v851, %v656
        %v858 = vmul.f32 %v851, %v657
        %v859 = vmul.f32 %v851, %v658
        %v860 = vmul.f32 %v851, %v659
        %v861 = vmul.f32 %v851, %v660
        %v862 = vmul.f32 %v851, %v661
        %v863 = vmul.f32 %v851, %v662
        %v864 = vmul.f32 %v851, %v663
        %v865 = vmul.f32 %v851, %v664
        %v866 = vmul.f32 %v851, %v665
        %v867 = vmul.f32 %v851, %v666
        %v868 = vmul.f32 %v851, %v667
        %v869 = vadd.f32 %v833, %v853
        %v870 = vadd.f32 %v834, %v854
        %v871 = vadd.f32 %v835, %v855
        %v872 = vadd.f32 %v836, %v856
        %v873 = vadd.f32 %v837, %v857
        %v874 = vadd.f32 %v838, %v858
        %v875 = vadd.f32 %v839, %v859
        %v876 = vadd.f32 %v840, %v860
        %v877 = vadd.f32 %v841, %v861
        %v878 = vadd.f32 %v842, %v862
        %v879 = vadd.f32 %v843, %v863
        %v880 = vadd.f32 %v844, %v864
        %v881 = vadd.f32 %v845, %v865
        %v882 = vadd.f32 %v846, %v866
        %v883 = vadd.f32 %v847, %v867
        %v884 = vadd.f32 %v848, %v868
        %885 = vset.pattern.permute.xlu0 6
        %886 = vperm.xlu0 %885, %v577
        %v887 = vpop.permute.xlu0 %886
        %v889 = vmul.f32 %v887, %v668
        %v890 = vmul.f32 %v887, %v669
        %v891 = vmul.f32 %v887, %v670
        %v892 = vmul.f32 %v887, %v671
        %v893 = vmul.f32 %v887, %v672
        %v894 = vmul.f32 %v887, %v673
        %v895 = vmul.f32 %v887, %v674
        %v896 = vmul.f32 %v887, %v675
        %v897 = vmul.f32 %v887, %v676
        %v898 = vmul.f32 %v887, %v677
        %v899 = vmul.f32 %v887, %v678
        %v900 = vmul.f32 %v887, %v679
        %v901 = vmul.f32 %v887, %v680
        %v902 = vmul.f32 %v887, %v681
        %v903 = vmul.f32 %v887, %v682
        %v904 = vmul.f32 %v887, %v683
        %v905 = vadd.f32 %v869, %v889
        %v906 = vadd.f32 %v870, %v890
        %v907 = vadd.f32 %v871, %v891
        %v908 = vadd.f32 %v872, %v892
        %v909 = vadd.f32 %v873, %v893
        %v910 = vadd.f32 %v874, %v894
        %v911 = vadd.f32 %v875, %v895
        %v912 = vadd.f32 %v876, %v896
        %v913 = vadd.f32 %v877, %v897
        %v914 = vadd.f32 %v878, %v898
        %v915 = vadd.f32 %v879, %v899
        %v916 = vadd.f32 %v880, %v900
        %v917 = vadd.f32 %v881, %v901
        %v918 = vadd.f32 %v882, %v902
        %v919 = vadd.f32 %v883, %v903
        %v920 = vadd.f32 %v884, %v904
        %921 = vset.pattern.permute.xlu0 7
        %922 = vperm.xlu0 %921, %v577
        %v923 = vpop.permute.xlu0 %922
        %v925 = vadd.f32 %v905, %v923
        %v926 = vadd.f32 %v906, %v923
        %v927 = vadd.f32 %v907, %v923
        %v928 = vadd.f32 %v908, %v923
        %v929 = vadd.f32 %v909, %v923
        %v930 = vadd.f32 %v910, %v923
        %v931 = vadd.f32 %v911, %v923
        %v932 = vadd.f32 %v912, %v923
        %v933 = vadd.f32 %v913, %v923
        %v934 = vadd.f32 %v914, %v923
        %v935 = vadd.f32 %v915, %v923
        %v936 = vadd.f32 %v916, %v923
        %v937 = vadd.f32 %v917, %v923
        %v938 = vadd.f32 %v918, %v923
        %v939 = vadd.f32 %v919, %v923
        %v940 = vadd.f32 %v920, %v923
        %v941 = vld [vmem:[%s500] sm:$0xff]
        %v942 = vld [vmem:[%s500 + $0x8] sm:$0xff]
        %v943 = vld [vmem:[%s500 + $0x10] sm:$0xff]
        %v944 = vld [vmem:[%s500 + $0x18] sm:$0xff]
        %v945 = vld [vmem:[%s500 + $0x20] sm:$0xff]
        %v946 = vld [vmem:[%s500 + $0x28] sm:$0xff]
        %v947 = vld [vmem:[%s500 + $0x30] sm:$0xff]
        %v948 = vld [vmem:[%s500 + $0x38] sm:$0xff]
        %v949 = vld [vmem:[%s500 + $0x40] sm:$0xff]
        %v950 = vld [vmem:[%s500 + $0x48] sm:$0xff]
        %v951 = vld [vmem:[%s500 + $0x50] sm:$0xff]
        %v952 = vld [vmem:[%s500 + $0x58] sm:$0xff]
        %v953 = vld [vmem:[%s500 + $0x60] sm:$0xff]
        %v954 = vld [vmem:[%s500 + $0x68] sm:$0xff]
        %v955 = vld [vmem:[%s500 + $0x70] sm:$0xff]
        %v956 = vld [vmem:[%s500 + $0x78] sm:$0xff]
        %v957 = vsub.f32 %v925, %v941
        %v958 = vsub.f32 %v926, %v942
        %v959 = vsub.f32 %v927, %v943
        %v960 = vsub.f32 %v928, %v944
        %v961 = vsub.f32 %v929, %v945
        %v962 = vsub.f32 %v930, %v946
        %v963 = vsub.f32 %v931, %v947
        %v964 = vsub.f32 %v932, %v948
        %v965 = vsub.f32 %v933, %v949
        %v966 = vsub.f32 %v934, %v950
        %v967 = vsub.f32 %v935, %v951
        %v968 = vsub.f32 %v936, %v952
        %v969 = vsub.f32 %v937, %v953
        %v970 = vsub.f32 %v938, %v954
        %v971 = vsub.f32 %v939, %v955
        %v972 = vsub.f32 %v940, %v956
        %973 = vset.pattern.permute.xlu0 8
        %974 = vperm.xlu0 %973, %v577
        %v975 = vpop.permute.xlu0 %974
        %v977 = vmul.f32 %v975, %v636
        %v978 = vmul.f32 %v975, %v637
        %v979 = vmul.f32 %v975, %v638
        %v980 = vmul.f32 %v975, %v639
        %v981 = vmul.f32 %v975, %v640
        %v982 = vmul.f32 %v975, %v641
        %v983 = vmul.f32 %v975, %v642
        %v984 = vmul.f32 %v975, %v643
        %v985 = vmul.f32 %v975, %v644
        %v986 = vmul.f32 %v975, %v645
        %v987 = vmul.f32 %v975, %v646
        %v988 = vmul.f32 %v975, %v647
        %v989 = vmul.f32 %v975, %v648
        %v990 = vmul.f32 %v975, %v649
        %v991 = vmul.f32 %v975, %v650
        %v992 = vmul.f32 %v975, %v651
        %993 = vset.pattern.permute.xlu0 9
        %994 = vperm.xlu0 %993, %v577
        %v995 = vpop.permute.xlu0 %994
        %v997 = vmul.f32 %v995, %v652
        %v998 = vmul.f32 %v995, %v653
        %v999 = vmul.f32 %v995, %v654
        %v1000 = vmul.f32 %v995, %v655
        %v1001 = vmul.f32 %v995, %v656
        %v1002 = vmul.f32 %v995, %v657
        %v1003 = vmul.f32 %v995, %v658
        %v1004 = vmul.f32 %v995, %v659
        %v1005 = vmul.f32 %v995, %v660
        %v1006 = vmul.f32 %v995, %v661
        %v1007 = vmul.f32 %v995, %v662
        %v1008 = vmul.f32 %v995, %v663
        %v1009 = vmul.f32 %v995, %v664
        %v1010 = vmul.f32 %v995, %v665
        %v1011 = vmul.f32 %v995, %v666
        %v1012 = vmul.f32 %v995, %v667
        %v1013 = vadd.f32 %v977, %v997
        %v1014 = vadd.f32 %v978, %v998
        %v1015 = vadd.f32 %v979, %v999
        %v1016 = vadd.f32 %v980, %v1000
        %v1017 = vadd.f32 %v981, %v1001
        %v1018 = vadd.f32 %v982, %v1002
        %v1019 = vadd.f32 %v983, %v1003
        %v1020 = vadd.f32 %v984, %v1004
        %v1021 = vadd.f32 %v985, %v1005
        %v1022 = vadd.f32 %v986, %v1006
        %v1023 = vadd.f32 %v987, %v1007
        %v1024 = vadd.f32 %v988, %v1008
        %v1025 = vadd.f32 %v989, %v1009
        %v1026 = vadd.f32 %v990, %v1010
        %v1027 = vadd.f32 %v991, %v1011
        %v1028 = vadd.f32 %v992, %v1012
        %1029 = vset.pattern.permute.xlu0 10
        %1030 = vperm.xlu0 %1029, %v577
        %v1031 = vpop.permute.xlu0 %1030
        %v1033 = vmul.f32 %v1031, %v668
        %v1034 = vmul.f32 %v1031, %v669
        %v1035 = vmul.f32 %v1031, %v670
        %v1036 = vmul.f32 %v1031, %v671
        %v1037 = vmul.f32 %v1031, %v672
        %v1038 = vmul.f32 %v1031, %v673
        %v1039 = vmul.f32 %v1031, %v674
        %v1040 = vmul.f32 %v1031, %v675
        %v1041 = vmul.f32 %v1031, %v676
        %v1042 = vmul.f32 %v1031, %v677
        %v1043 = vmul.f32 %v1031, %v678
        %v1044 = vmul.f32 %v1031, %v679
        %v1045 = vmul.f32 %v1031, %v680
        %v1046 = vmul.f32 %v1031, %v681
        %v1047 = vmul.f32 %v1031, %v682
        %v1048 = vmul.f32 %v1031, %v683
        %v1049 = vadd.f32 %v1013, %v1033
        %v1050 = vadd.f32 %v1014, %v1034
        %v1051 = vadd.f32 %v1015, %v1035
        %v1052 = vadd.f32 %v1016, %v1036
        %v1053 = vadd.f32 %v1017, %v1037
        %v1054 = vadd.f32 %v1018, %v1038
        %v1055 = vadd.f32 %v1019, %v1039
        %v1056 = vadd.f32 %v1020, %v1040
        %v1057 = vadd.f32 %v1021, %v1041
        %v1058 = vadd.f32 %v1022, %v1042
        %v1059 = vadd.f32 %v1023, %v1043
        %v1060 = vadd.f32 %v1024, %v1044
        %v1061 = vadd.f32 %v1025, %v1045
        %v1062 = vadd.f32 %v1026, %v1046
        %v1063 = vadd.f32 %v1027, %v1047
        %v1064 = vadd.f32 %v1028, %v1048
        %1065 = vset.pattern.permute.xlu0 11
        %1066 = vperm.xlu0 %1065, %v577
        %v1067 = vpop.permute.xlu0 %1066
        %v1069 = vadd.f32 %v1049, %v1067
        %v1070 = vadd.f32 %v1050, %v1067
        %v1071 = vadd.f32 %v1051, %v1067
        %v1072 = vadd.f32 %v1052, %v1067
        %v1073 = vadd.f32 %v1053, %v1067
        %v1074 = vadd.f32 %v1054, %v1067
        %v1075 = vadd.f32 %v1055, %v1067
        %v1076 = vadd.f32 %v1056, %v1067
        %v1077 = vadd.f32 %v1057, %v1067
        %v1078 = vadd.f32 %v1058, %v1067
        %v1079 = vadd.f32 %v1059, %v1067
        %v1080 = vadd.f32 %v1060, %v1067
        %v1081 = vadd.f32 %v1061, %v1067
        %v1082 = vadd.f32 %v1062, %v1067
        %v1083 = vadd.f32 %v1063, %v1067
        %v1084 = vadd.f32 %v1064, %v1067
        %v1085 = vld [vmem:[%s509] sm:$0xff]
        %v1086 = vld [vmem:[%s509 + $0x8] sm:$0xff]
        %v1087 = vld [vmem:[%s509 + $0x10] sm:$0xff]
        %v1088 = vld [vmem:[%s509 + $0x18] sm:$0xff]
        %v1089 = vld [vmem:[%s509 + $0x20] sm:$0xff]
        %v1090 = vld [vmem:[%s509 + $0x28] sm:$0xff]
        %v1091 = vld [vmem:[%s509 + $0x30] sm:$0xff]
        %v1092 = vld [vmem:[%s509 + $0x38] sm:$0xff]
        %v1093 = vld [vmem:[%s509 + $0x40] sm:$0xff]
        %v1094 = vld [vmem:[%s509 + $0x48] sm:$0xff]
        %v1095 = vld [vmem:[%s509 + $0x50] sm:$0xff]
        %v1096 = vld [vmem:[%s509 + $0x58] sm:$0xff]
        %v1097 = vld [vmem:[%s509 + $0x60] sm:$0xff]
        %v1098 = vld [vmem:[%s509 + $0x68] sm:$0xff]
        %v1099 = vld [vmem:[%s509 + $0x70] sm:$0xff]
        %v1100 = vld [vmem:[%s509 + $0x78] sm:$0xff]
        %v1101 = vsub.f32 %v1069, %v1085
        %v1102 = vsub.f32 %v1070, %v1086
        %v1103 = vsub.f32 %v1071, %v1087
        %v1104 = vsub.f32 %v1072, %v1088
        %v1105 = vsub.f32 %v1073, %v1089
        %v1106 = vsub.f32 %v1074, %v1090
        %v1107 = vsub.f32 %v1075, %v1091
        %v1108 = vsub.f32 %v1076, %v1092
        %v1109 = vsub.f32 %v1077, %v1093
        %v1110 = vsub.f32 %v1078, %v1094
        %v1111 = vsub.f32 %v1079, %v1095
        %v1112 = vsub.f32 %v1080, %v1096
        %v1113 = vsub.f32 %v1081, %v1097
        %v1114 = vsub.f32 %v1082, %v1098
        %v1115 = vsub.f32 %v1083, %v1099
        %v1116 = vsub.f32 %v1084, %v1100
        %v1117 = vmul.f32 %v813, %v813
        %v1118 = vmul.f32 %v814, %v814
        %v1119 = vmul.f32 %v815, %v815
        %v1120 = vmul.f32 %v816, %v816
        %v1121 = vmul.f32 %v817, %v817
        %v1122 = vmul.f32 %v818, %v818
        %v1123 = vmul.f32 %v819, %v819
        %v1124 = vmul.f32 %v820, %v820
        %v1125 = vmul.f32 %v821, %v821
        %v1126 = vmul.f32 %v822, %v822
        %v1127 = vmul.f32 %v823, %v823
        %v1128 = vmul.f32 %v824, %v824
        %v1129 = vmul.f32 %v825, %v825
        %v1130 = vmul.f32 %v826, %v826
        %v1131 = vmul.f32 %v827, %v827
        %v1132 = vmul.f32 %v828, %v828
        %v1133 = vmul.f32 %v957, %v957
        %v1134 = vmul.f32 %v958, %v958
        %v1135 = vmul.f32 %v959, %v959
        %v1136 = vmul.f32 %v960, %v960
        %v1137 = vmul.f32 %v961, %v961
        %v1138 = vmul.f32 %v962, %v962
        %v1139 = vmul.f32 %v963, %v963
        %v1140 = vmul.f32 %v964, %v964
        %v1141 = vmul.f32 %v965, %v965
        %v1142 = vmul.f32 %v966, %v966
        %v1143 = vmul.f32 %v967, %v967
        %v1144 = vmul.f32 %v968, %v968
        %v1145 = vmul.f32 %v969, %v969
        %v1146 = vmul.f32 %v970, %v970
        %v1147 = vmul.f32 %v971, %v971
        %v1148 = vmul.f32 %v972, %v972
        %v1149 = vadd.f32 %v1117, %v1133
        %v1150 = vadd.f32 %v1118, %v1134
        %v1151 = vadd.f32 %v1119, %v1135
        %v1152 = vadd.f32 %v1120, %v1136
        %v1153 = vadd.f32 %v1121, %v1137
        %v1154 = vadd.f32 %v1122, %v1138
        %v1155 = vadd.f32 %v1123, %v1139
        %v1156 = vadd.f32 %v1124, %v1140
        %v1157 = vadd.f32 %v1125, %v1141
        %v1158 = vadd.f32 %v1126, %v1142
        %v1159 = vadd.f32 %v1127, %v1143
        %v1160 = vadd.f32 %v1128, %v1144
        %v1161 = vadd.f32 %v1129, %v1145
        %v1162 = vadd.f32 %v1130, %v1146
        %v1163 = vadd.f32 %v1131, %v1147
        %v1164 = vadd.f32 %v1132, %v1148
        %v1165 = vmul.f32 %v1101, %v1101
        %v1166 = vmul.f32 %v1102, %v1102
        %v1167 = vmul.f32 %v1103, %v1103
        %v1168 = vmul.f32 %v1104, %v1104
        %v1169 = vmul.f32 %v1105, %v1105
        %v1170 = vmul.f32 %v1106, %v1106
        %v1171 = vmul.f32 %v1107, %v1107
        %v1172 = vmul.f32 %v1108, %v1108
        %v1173 = vmul.f32 %v1109, %v1109
        %v1174 = vmul.f32 %v1110, %v1110
        %v1175 = vmul.f32 %v1111, %v1111
        %v1176 = vmul.f32 %v1112, %v1112
        %v1177 = vmul.f32 %v1113, %v1113
        %v1178 = vmul.f32 %v1114, %v1114
        %v1179 = vmul.f32 %v1115, %v1115
        %v1180 = vmul.f32 %v1116, %v1116
        %v1181 = vadd.f32 %v1149, %v1165
        %v1182 = vadd.f32 %v1150, %v1166
        %v1183 = vadd.f32 %v1151, %v1167
        %v1184 = vadd.f32 %v1152, %v1168
        %v1185 = vadd.f32 %v1153, %v1169
        %v1186 = vadd.f32 %v1154, %v1170
        %v1187 = vadd.f32 %v1155, %v1171
        %v1188 = vadd.f32 %v1156, %v1172
        %v1189 = vadd.f32 %v1157, %v1173
        %v1190 = vadd.f32 %v1158, %v1174
        %v1191 = vadd.f32 %v1159, %v1175
        %v1192 = vadd.f32 %v1160, %v1176
        %v1193 = vadd.f32 %v1161, %v1177
        %v1194 = vadd.f32 %v1162, %v1178
        %v1195 = vadd.f32 %v1163, %v1179
        %v1196 = vadd.f32 %v1164, %v1180
        %v1197 = vrsqrt.pop %v1181
        %v1198 = vmul.f32 %v1181, %v1197
        %vm1199 = vcmp.eq.f32.partialorder %v1181, inf
        %v1200 = vsel %vm1199, %v1181, %v1198
        %vm1201 = vcmp.eq.f32.partialorder %v1181, 0.0
        %v1202 = vand.u32 %v1181, 2147483648
        %v1203 = vsel %vm1201, %v1202, %v1200
        %v1204 = vrsqrt.pop %v1182
        %v1205 = vmul.f32 %v1182, %v1204
        %vm1206 = vcmp.eq.f32.partialorder %v1182, inf
        %v1207 = vsel %vm1206, %v1182, %v1205
        %vm1208 = vcmp.eq.f32.partialorder %v1182, 0.0
        %v1209 = vand.u32 %v1182, 2147483648
        %v1210 = vsel %vm1208, %v1209, %v1207
        %v1211 = vrsqrt.pop %v1183
        %v1212 = vmul.f32 %v1183, %v1211
        %vm1213 = vcmp.eq.f32.partialorder %v1183, inf
        %v1214 = vsel %vm1213, %v1183, %v1212
        %vm1215 = vcmp.eq.f32.partialorder %v1183, 0.0
        %v1216 = vand.u32 %v1183, 2147483648
        %v1217 = vsel %vm1215, %v1216, %v1214
        %v1218 = vrsqrt.pop %v1184
        %v1219 = vmul.f32 %v1184, %v1218
        %vm1220 = vcmp.eq.f32.partialorder %v1184, inf
        %v1221 = vsel %vm1220, %v1184, %v1219
        %vm1222 = vcmp.eq.f32.partialorder %v1184, 0.0
        %v1223 = vand.u32 %v1184, 2147483648
        %v1224 = vsel %vm1222, %v1223, %v1221
        %v1225 = vrsqrt.pop %v1185
        %v1226 = vmul.f32 %v1185, %v1225
        %vm1227 = vcmp.eq.f32.partialorder %v1185, inf
        %v1228 = vsel %vm1227, %v1185, %v1226
        %vm1229 = vcmp.eq.f32.partialorder %v1185, 0.0
        %v1230 = vand.u32 %v1185, 2147483648
        %v1231 = vsel %vm1229, %v1230, %v1228
        %v1232 = vrsqrt.pop %v1186
        %v1233 = vmul.f32 %v1186, %v1232
        %vm1234 = vcmp.eq.f32.partialorder %v1186, inf
        %v1235 = vsel %vm1234, %v1186, %v1233
        %vm1236 = vcmp.eq.f32.partialorder %v1186, 0.0
        %v1237 = vand.u32 %v1186, 2147483648
        %v1238 = vsel %vm1236, %v1237, %v1235
        %v1239 = vrsqrt.pop %v1187
        %v1240 = vmul.f32 %v1187, %v1239
        %vm1241 = vcmp.eq.f32.partialorder %v1187, inf
        %v1242 = vsel %vm1241, %v1187, %v1240
        %vm1243 = vcmp.eq.f32.partialorder %v1187, 0.0
        %v1244 = vand.u32 %v1187, 2147483648
        %v1245 = vsel %vm1243, %v1244, %v1242
        %v1246 = vrsqrt.pop %v1188
        %v1247 = vmul.f32 %v1188, %v1246
        %vm1248 = vcmp.eq.f32.partialorder %v1188, inf
        %v1249 = vsel %vm1248, %v1188, %v1247
        %vm1250 = vcmp.eq.f32.partialorder %v1188, 0.0
        %v1251 = vand.u32 %v1188, 2147483648
        %v1252 = vsel %vm1250, %v1251, %v1249
        %v1253 = vrsqrt.pop %v1189
        %v1254 = vmul.f32 %v1189, %v1253
        %vm1255 = vcmp.eq.f32.partialorder %v1189, inf
        %v1256 = vsel %vm1255, %v1189, %v1254
        %vm1257 = vcmp.eq.f32.partialorder %v1189, 0.0
        %v1258 = vand.u32 %v1189, 2147483648
        %v1259 = vsel %vm1257, %v1258, %v1256
        %v1260 = vrsqrt.pop %v1190
        %v1261 = vmul.f32 %v1190, %v1260
        %vm1262 = vcmp.eq.f32.partialorder %v1190, inf
        %v1263 = vsel %vm1262, %v1190, %v1261
        %vm1264 = vcmp.eq.f32.partialorder %v1190, 0.0
        %v1265 = vand.u32 %v1190, 2147483648
        %v1266 = vsel %vm1264, %v1265, %v1263
        %v1267 = vrsqrt.pop %v1191
        %v1268 = vmul.f32 %v1191, %v1267
        %vm1269 = vcmp.eq.f32.partialorder %v1191, inf
        %v1270 = vsel %vm1269, %v1191, %v1268
        %vm1271 = vcmp.eq.f32.partialorder %v1191, 0.0
        %v1272 = vand.u32 %v1191, 2147483648
        %v1273 = vsel %vm1271, %v1272, %v1270
        %v1274 = vrsqrt.pop %v1192
        %v1275 = vmul.f32 %v1192, %v1274
        %vm1276 = vcmp.eq.f32.partialorder %v1192, inf
        %v1277 = vsel %vm1276, %v1192, %v1275
        %vm1278 = vcmp.eq.f32.partialorder %v1192, 0.0
        %v1279 = vand.u32 %v1192, 2147483648
        %v1280 = vsel %vm1278, %v1279, %v1277
        %v1281 = vrsqrt.pop %v1193
        %v1282 = vmul.f32 %v1193, %v1281
        %vm1283 = vcmp.eq.f32.partialorder %v1193, inf
        %v1284 = vsel %vm1283, %v1193, %v1282
        %vm1285 = vcmp.eq.f32.partialorder %v1193, 0.0
        %v1286 = vand.u32 %v1193, 2147483648
        %v1287 = vsel %vm1285, %v1286, %v1284
        %v1288 = vrsqrt.pop %v1194
        %v1289 = vmul.f32 %v1194, %v1288
        %vm1290 = vcmp.eq.f32.partialorder %v1194, inf
        %v1291 = vsel %vm1290, %v1194, %v1289
        %vm1292 = vcmp.eq.f32.partialorder %v1194, 0.0
        %v1293 = vand.u32 %v1194, 2147483648
        %v1294 = vsel %vm1292, %v1293, %v1291
        %v1295 = vrsqrt.pop %v1195
        %v1296 = vmul.f32 %v1195, %v1295
        %vm1297 = vcmp.eq.f32.partialorder %v1195, inf
        %v1298 = vsel %vm1297, %v1195, %v1296
        %vm1299 = vcmp.eq.f32.partialorder %v1195, 0.0
        %v1300 = vand.u32 %v1195, 2147483648
        %v1301 = vsel %vm1299, %v1300, %v1298
        %v1302 = vrsqrt.pop %v1196
        %v1303 = vmul.f32 %v1196, %v1302
        %vm1304 = vcmp.eq.f32.partialorder %v1196, inf
        %v1305 = vsel %vm1304, %v1196, %v1303
        %vm1306 = vcmp.eq.f32.partialorder %v1196, 0.0
        %v1307 = vand.u32 %v1196, 2147483648
        %v1308 = vsel %vm1306, %v1307, %v1305
        %v1309 = vadd.f32 %v1203, %v1210
        %v1310 = vadd.f32 %v1309, %v1217
        %v1311 = vadd.f32 %v1310, %v1224
        %v1312 = vadd.f32 %v1311, %v1231
        %v1313 = vadd.f32 %v1312, %v1238
        %v1314 = vadd.f32 %v1313, %v1245
        %v1315 = vadd.f32 %v1314, %v1252
        %v1316 = vadd.f32 %v1315, %v1259
        %v1317 = vadd.f32 %v1316, %v1266
        %v1318 = vadd.f32 %v1317, %v1273
        %v1319 = vadd.f32 %v1318, %v1280
        %v1320 = vadd.f32 %v1319, %v1287
        %v1321 = vadd.f32 %v1320, %v1294
        %v1322 = vadd.f32 %v1321, %v1301
        %v1323 = vadd.f32 %v1322, %v1308
        %1324 = vadd.xlane.f32.xlu0 %v1323
        %v1325 = vpop.xlane.xlu0 %1324
        %v1326 = vrcp.pop 2048.0
        %v1327 = vmul.f32 %v1325, %v1326
        %v1328 = vlaneseq
        %v1329 = vand.u32 %v1328, 127
        %vm1330 = vcmp.eq.s32.totalorder %v1329, 0
        %1332 = vset.pattern.permute.xlu0 0
        %1333 = vperm.xlu0 %1332, %v616
        %v1334 = vpop.permute.xlu0 %1333
        %v1336 = vsel %vm1330, %v1334, 0.0
        %vm1337 = vcmp.eq.s32.totalorder %v1329, 1
        %1339 = vset.pattern.permute.xlu0 3
        %1340 = vperm.xlu0 %1339, %v635
        %v1341 = vpop.permute.xlu0 %1340
        %v1343 = vsel %vm1337, %v1341, 0.0
        %v1344 = vadd.f32 %v1336, %v1343
        %vm1345 = vcmp.eq.s32.totalorder %v1329, 2
        %v1346 = vsel %vm1345, %v1327, 0.0
        %v1347 = vadd.f32 %v1344, %v1346
        %1348 = vst [vmem:[%s576] sm:$0xff] %v1347
        %s1349 = sand.u32 %s253, 1
        %s1350 = scalar_lea.sflag [#allocation4], %s1349
        %s1351 = sand.u32 %s253, 1
        %s1352 = smul.addr %s1351, 8
        %s1353 = scalar_lea.vmem [#allocation16], %s1352
        // Predicated region
        $region85: #{tpu_custom_call.1} parent=51 // pred_check
          %p1354 = pneg %p263
        $region86: #{tpu_custom_call.1} parent=51 // pred_check_branch
          %1356 = sbr.rel (%p1354) target = $region88
        $region87: #{tpu_custom_call.1} parent=51 // pred_region
          %s1358 = ssub.s32 128, 128
          %1359 = vsyncadd %s1350, %s1358
          %s1360 = smul.addr %s37, 128
          %s1361 = scalar_lea.hbm %s8, %s1360
          %s1363 = sshll.u32 %s1353, 4
          %s1364 = int_to_ptr.vmem [resolvable:$true] %s1363
          %1366 = dma.vmem_to_hbm [thread:$0]  %s1364, 128, %s1361, %s1350
        $region88: #{tpu_custom_call.1} parent=51 // pred_fallthru
          _
      $region52: #{tpu_custom_call.1} parent=5 // pred_fallthru
        _
      %p1367 = scmp.le.s32.totalorder 2, %s32
      // Predicated region
      $region89: #{tpu_custom_call.1} parent=5 // pred_check
        %p1368 = pneg %p1367
      $region90: #{tpu_custom_call.1} parent=5 // pred_check_branch
        %1370 = sbr.rel (%p1368) target = $region92
      $region91: #{tpu_custom_call.1} parent=5 // pred_region
        %s1371 = ssub.s32 %s32, 2
        // Predicated region
        $region93: #{tpu_custom_call.1} parent=91 // pred_check
          %p1372 = pneg %p269
        $region94: #{tpu_custom_call.1} parent=91 // pred_check_branch
          %1374 = sbr.rel (%p1372) target = $region96
        $region95: #{tpu_custom_call.1} parent=91 // pred_region
          %s1375 = sand.u32 %s254, 1
          %s1376 = scalar_lea.sflag [#allocation4], %s1375
          %s1377 = sand.u32 %s254, 1
          %s1378 = smul.addr %s1377, 8
          %s1379 = scalar_lea.vmem [#allocation16], %s1378
          %1380 = dma.done %s1376, 128
        $region96: #{tpu_custom_call.1} parent=91 // pred_fallthru
          _
      $region92: #{tpu_custom_call.1} parent=5 // pred_fallthru
        _
    $region6: #{tpu_custom_call.1} parent=1 // loop_footer
      %s36 = sadd.s32 1, %s32
    $region7: #{tpu_custom_call.1} parent=1 // loop_footer_branch
      %31 = sbr.rel target = $region3
    $region8: #{tpu_custom_call.1} parent=1 // loop_exit
      _
    %1381 = vsyncpa [#allocation3], 1
    %s1382 = scalar_lea.sflag [#allocation3], 1
    %1383 = vsyncpa %s1382, 1
    %1384 = vsyncpa [#allocation6], 1
    %s1385 = scalar_lea.sflag [#allocation6], 1
    %1386 = vsyncpa %s1385, 1
    %1387 = vsyncpa [#allocation9], 1
    %s1388 = scalar_lea.sflag [#allocation9], 1
    %1389 = vsyncpa %s1388, 1
    %1390 = vsyncpa [#allocation12], 1
    %s1391 = scalar_lea.sflag [#allocation12], 1
    %1392 = vsyncpa %s1391, 1
    %1393 = vsyncpa [#allocation15], 1
    %s1394 = scalar_lea.sflag [#allocation15], 1
    %1395 = vsyncpa %s1394, 1
    %1396 = vsyncpa [#allocation4], 1
    %s1397 = scalar_lea.sflag [#allocation4], 1
    %1398 = vsyncpa %s1397, 1

</llo_original>
